<compile_context>
chip_gen: v7x
topology: tpu7x:2x2x1
jax: 0.10.0
libtpu: 0.0.40
codegen_flags: <defaults>
</compile_context>

<pallas_src>
import numpy as np
import jax
import jax.numpy as jnp
from jax.experimental import pallas as pl
from jax.experimental.pallas import tpu as pltpu


# ----------------------------------------------------------------------------
# Pallas kernel: one (b_tile*L, C) activation tile per grid step, K fused
# bottleneck blocks applied while the tile stays in VMEM.
# ----------------------------------------------------------------------------
def fused_senext_kernel(x_ref, mprev_ref, mnext_ref, pool_ref, bcast_ref,
                        w1_ref, b1_ref,          # conv1 (1x1), BN scale folded
                        w2_ref, b2_ref,          # conv2 depthwise 3-tap, BN folded
                        w3_ref, b3_ref,          # conv3 (1x1), BN folded (no relu)
                        wse1_ref, bse1_ref,      # SE squeeze conv (with bias)
                        wse2_ref, bse2_ref,      # SE excite conv (with bias)
                        o_ref):
    M = x_ref.shape[0]                 # rows in this tile = b_tile * L
    K = w1_ref.shape[0]                # number of fused bottleneck blocks

    m_prev = mprev_ref[...]            # (M, 1) f32: 0.0 where l == 0 else 1.0
    m_next = mnext_ref[...]            # (M, 1) f32: 0.0 where l == L-1 else 1.0
    pool = pool_ref[...]               # (B, M) bf16: per-sequence avg-pool matrix (1/L)
    bcast = bcast_ref[...]             # (M, B) bf16: per-sequence broadcast matrix (1.0)

    cur = x_ref[...]                   # (M, Cin) bf16 running activation

    for k in range(K):                 # static unroll over fused blocks (K is small)
        # ---- conv1: 1x1 conv (BN scale pre-folded into W1) -> bias -> ReLU ----
        h = jnp.dot(cur, w1_ref[k], preferred_element_type=jnp.float32)
        h = jnp.maximum(h + b1_ref[k], 0.0)                        # (M, mid) f32

        # ---- conv2: depthwise 3-tap conv (groups == mid), padding=1 ----
        # Shifts via XLU roll over the flattened rows; hoisted (M,1) masks zero
        # the wrap-around rows so zero padding holds and no data leaks between
        # the b_tile sequences packed into this tile.
        w2k = w2_ref[k]                                            # (3, 1, mid) f32
        h_prev = pltpu.roll(h, 1, axis=0) * m_prev                 # h[l-1]
        h_next = pltpu.roll(h, M - 1, axis=0) * m_next             # h[l+1]
        acc = h_prev * w2k[0] + h * w2k[1] + h_next * w2k[2]       # VPU FMAs
        h2 = jnp.maximum(acc + b2_ref[k], 0.0)                     # (M, mid) f32

        # ---- conv3: 1x1 conv (BN folded) -> bias, no activation ----
        h3 = jnp.dot(h2.astype(jnp.bfloat16), w3_ref[k],
                     preferred_element_type=jnp.float32) + b3_ref[k]   # (M, Cout) f32

        # ---- SE: per-sequence avg pool -> 1x1 -> ReLU -> 1x1 -> additive gate ----
        pooled = jnp.dot(pool, h3.astype(jnp.bfloat16),
                         preferred_element_type=jnp.float32)           # (B, Cout)
        z = jnp.dot(pooled.astype(jnp.bfloat16), wse1_ref[k],
                    preferred_element_type=jnp.float32) + bse1_ref[k]
        z = jnp.maximum(z, 0.0)
        z = jnp.dot(z.astype(jnp.bfloat16), wse2_ref[k],
                    preferred_element_type=jnp.float32) + bse2_ref[k]  # (B, Cout)
        gate = jnp.dot(bcast, jax.nn.sigmoid(z).astype(jnp.bfloat16),
                       preferred_element_type=jnp.float32)             # (M, Cout)

        # ---- identity residual + ReLU (stride=1, is_shortcut=False) ----
        out = jnp.maximum(cur.astype(jnp.float32) + h3 + gate, 0.0)
        cur = out.astype(jnp.bfloat16)

    o_ref[...] = cur


# ----------------------------------------------------------------------------
# Wrapper: channels-last [N, L, C] in/out; presents 2-D (N*L, C) bf16 to the
# kernel (the wrapper reshapes are contiguous and free).
# ----------------------------------------------------------------------------
def fused_senext_bottlenecks_nlc(x_nlc, params_list, *, b_tile=2):
    N, L, C = x_nlc.shape
    Cout = params_list[-1]["W3"].shape[1]
    assert C == Cout, "identity residual requires in_channels == out_channels"
    assert N % b_tile == 0, "batch must be divisible by b_tile"
    assert L % 8 == 0, "L must be a multiple of the sublane tile (8)"
    M_tile = b_tile * L

    # Stack per-block weights along a leading K axis; they stay resident in VMEM
    # (constant index_map => no per-step re-fetch).
    names = ("W1", "b1", "W2", "b2", "W3", "b3", "Wse1", "bse1", "Wse2", "bse2")
    weights = [jnp.stack([p[nm] for p in params_list], axis=0) for nm in names]

    # Hoisted per-tile row tables (same for every batch tile).
    rows = np.arange(M_tile)
    l_pos = rows % L
    seq = rows // L
    mask_prev = jnp.asarray((l_pos != 0).astype(np.float32)[:, None])        # (M,1)
    mask_next = jnp.asarray((l_pos != L - 1).astype(np.float32)[:, None])    # (M,1)
    pool_mat = jnp.asarray(                                                  # (B,M)
        (seq[None, :] == np.arange(b_tile)[:, None]).astype(np.float32) / L
    ).astype(jnp.bfloat16)
    bcast_mat = jnp.asarray(                                                 # (M,B)
        (seq[:, None] == np.arange(b_tile)[None, :]).astype(np.float32)
    ).astype(jnp.bfloat16)

    x2d = x_nlc.astype(jnp.bfloat16).reshape(N * L, C)   # bf16 HBM activations

    def const_spec(a):
        nd = a.ndim
        return pl.BlockSpec(a.shape, lambda n, _nd=nd: (0,) * _nd)

    consts = [mask_prev, mask_next, pool_mat, bcast_mat] + weights
    in_specs = ([pl.BlockSpec((M_tile, C), lambda n: (n, 0))]
                + [const_spec(a) for a in consts])

    out2d = pl.pallas_call(
        fused_senext_kernel,
        out_shape=jax.ShapeDtypeStruct((N * L, Cout), jnp.bfloat16),
        grid_spec=pltpu.PrefetchScalarGridSpec(
            num_scalar_prefetch=0,
            grid=(N // b_tile,),
            in_specs=in_specs,
            out_specs=pl.BlockSpec((M_tile, Cout), lambda n: (n, 0)),
        ),
        compiler_params=pltpu.CompilerParams(
            dimension_semantics=("parallel",),   # batch tiles shard across TCs (v7x)
            # At real Encoder shapes (large C / b_tile / K), budget the fused
            # tile against v7x's 64 MiB VMEM and raise vmem_limit_bytes here.
        ),
    )(x2d, *consts)
    return out2d.reshape(N, L, Cout)


# ----------------------------------------------------------------------------
# Deterministic parameter construction. BatchNorm (inference) is folded to
# scale/bias, the scale is folded into the conv weight, and MXU-facing weights
# are stored bf16 (shared by kernel and reference so the check stays tight).
# ----------------------------------------------------------------------------
def make_params(key, in_channels, out_channels, groups, reduction):
    mid = out_channels // 2
    assert mid % groups == 0 and mid // groups == 1, \
        "this kernel's conv2 path assumes groups == mid (depthwise)"
    se_hidden = out_channels // reduction
    ks = jax.random.split(key, 16)
    eps = 1e-5

    def bn_fold(kg, kb, km, kv, c):
        gamma = jax.random.uniform(kg, (1, c), jnp.float32, 0.5, 1.5)
        beta = jax.random.normal(kb, (1, c), jnp.float32) * 0.1
        mean = jax.random.normal(km, (1, c), jnp.float32) * 0.1
        var = jax.random.uniform(kv, (1, c), jnp.float32, 0.5, 1.5)
        scale = gamma / jnp.sqrt(var + eps)
        bias = beta - mean * scale
        return scale, bias

    # conv1: PyTorch (mid, Cin, 1) -> dense (Cin, mid); BN scale folded; bf16.
    W1 = jax.random.normal(ks[0], (in_channels, mid), jnp.float32) * 0.1
    s1, b1 = bn_fold(ks[1], ks[2], ks[3], ks[4], mid)
    W1 = (W1 * s1).astype(jnp.bfloat16)

    # conv2: depthwise PyTorch weight (mid, 1, 3) -> taps (3, 1, mid); BN folded; f32 (VPU).
    w2_pt = jax.random.normal(ks[5], (mid, 1, 3), jnp.float32) * 0.1
    s2, b2 = bn_fold(ks[6], ks[7], ks[8], ks[9], mid)
    W2 = jnp.transpose(w2_pt, (2, 1, 0)) * s2            # W2[k, 0, c] = w_pt[c, 0, k]*s2[c]

    # conv3: PyTorch (Cout, mid, 1) -> dense (mid, Cout); BN folded; bf16.
    W3 = jax.random.normal(ks[10], (mid, out_channels), jnp.float32) * 0.1
    s3, b3 = bn_fold(ks[11], ks[12], ks[13], ks[14], out_channels)
    W3 = (W3 * s3).astype(jnp.bfloat16)

    # SE module 1x1 convs (with bias); matmul weights bf16, biases f32.
    k_a, k_b, k_c, k_d = jax.random.split(ks[15], 4)
    Wse1 = (jax.random.normal(k_a, (out_channels, se_hidden), jnp.float32) * 0.1
            ).astype(jnp.bfloat16)
    bse1 = jax.random.normal(k_b, (1, se_hidden), jnp.float32) * 0.1
    Wse2 = (jax.random.normal(k_c, (se_hidden, out_channels), jnp.float32) * 0.1
            ).astype(jnp.bfloat16)
    bse2 = jax.random.normal(k_d, (1, out_channels), jnp.float32) * 0.1

    return dict(W1=W1, b1=b1, W2=W2, b2=b2, W3=W3, b3=b3,
                Wse1=Wse1, bse1=bse1, Wse2=Wse2, bse2=bse2)


# ----------------------------------------------------------------------------
# Pure-JAX f32 reference (same bf16-quantized weights, pad+slice for conv2).
# ----------------------------------------------------------------------------
def reference_nlc(x_nlc, params_list):
    x = x_nlc.astype(jnp.float32)
    L = x.shape[1]
    for p in params_list:
        W1 = p["W1"].astype(jnp.float32)
        W3 = p["W3"].astype(jnp.float32)
        Wse1 = p["Wse1"].astype(jnp.float32)
        Wse2 = p["Wse2"].astype(jnp.float32)
        h = jnp.maximum(jnp.einsum("nlc,cd->nld", x, W1) + p["b1"], 0.0)
        hp = jnp.pad(h, ((0, 0), (1, 1), (0, 0)))
        w2 = p["W2"]                                     # (3, 1, mid)
        acc = hp[:, 0:L] * w2[0] + hp[:, 1:L + 1] * w2[1] + hp[:, 2:L + 2] * w2[2]
        h2 = jnp.maximum(acc + p["b2"], 0.0)
        h3 = jnp.einsum("nlc,cd->nld", h2, W3) + p["b3"]
        pooled = jnp.mean(h3, axis=1, keepdims=True)
        z = jnp.maximum(jnp.einsum("nlc,cd->nld", pooled, Wse1) + p["bse1"], 0.0)
        z = jnp.einsum("nlc,cd->nld", z, Wse2) + p["bse2"]
        h4 = h3 + jax.nn.sigmoid(z)
        x = jnp.maximum(x + h4, 0.0)
    return x


if __name__ == "__main__":
    # in_channels = out_channels = 64 (identity residual), groups = 32 (=> mid = 32,
    # depthwise conv2), reduction = 16 (module defaults).  K = 2 fused blocks
    # (a Sequential stack of stride-1 bottlenecks, as the Encoder builds per stage).
    N, L, C = 16, 32, 64
    groups, reduction = 32, 16
    K = 2
    b_tile = 2          # grid = N//b_tile = 8 steps -> >=4 per v7x core

    key = jax.random.PRNGKey(0)
    k_x, k_p = jax.random.split(key)
    x_f32 = jax.random.normal(k_x, (N, L, C), jnp.float32)    # channels-last input
    x_bf16 = x_f32.astype(jnp.bfloat16)                       # bf16 HBM activations
    params_list = [make_params(kk, C, C, groups, reduction)
                   for kk in jax.random.split(k_p, K)]

    out = jax.block_until_ready(
        fused_senext_bottlenecks_nlc(x_bf16, params_list, b_tile=b_tile))
    ref = jax.block_until_ready(
        reference_nlc(x_bf16.astype(jnp.float32), params_list))

    assert out.shape == (N, L, C)
    np.testing.assert_allclose(np.asarray(out, dtype=np.float32), np.asarray(ref),
                               rtol=3e-2, atol=3e-2)

    print("KERNEL_OK")
</pallas_src>

<mosaic_0001>
module attributes {stable_mosaic.version = 11 : i64} {
  func.func @fused_senext_kernel(%arg0: i32, %arg1: memref<64x64xbf16, #tpu.memory_space<vmem>>, %arg2: memref<64x1xf32, #tpu.memory_space<vmem>>, %arg3: memref<64x1xf32, #tpu.memory_space<vmem>>, %arg4: memref<2x64xbf16, #tpu.memory_space<vmem>>, %arg5: memref<64x2xbf16, #tpu.memory_space<vmem>>, %arg6: memref<2x64x32xbf16, #tpu.memory_space<vmem>>, %arg7: memref<2x1x32xf32, #tpu.memory_space<vmem>>, %arg8: memref<2x3x1x32xf32, #tpu.memory_space<vmem>>, %arg9: memref<2x1x32xf32, #tpu.memory_space<vmem>>, %arg10: memref<2x32x64xbf16, #tpu.memory_space<vmem>>, %arg11: memref<2x1x64xf32, #tpu.memory_space<vmem>>, %arg12: memref<2x64x4xbf16, #tpu.memory_space<vmem>>, %arg13: memref<2x1x4xf32, #tpu.memory_space<vmem>>, %arg14: memref<2x4x64xbf16, #tpu.memory_space<vmem>>, %arg15: memref<2x1x64xf32, #tpu.memory_space<vmem>>, %arg16: memref<64x64xbf16, #tpu.memory_space<vmem>>) attributes {dimension_semantics = [#tpu.dimension_semantics<parallel>], iteration_bounds = array<i64: 8>, scalar_prefetch = 0 : i64, scratch_operands = 0 : i64, tpu.core_type = #tpu.core_type<tc>, window_params = [{transform_indices = @transform_0, window_bounds = array<i64: 64, 64>}, {pipeline_mode = #tpu.pipeline_mode<synchronous>, transform_indices = @transform_1, window_bounds = array<i64: 64, 1>}, {pipeline_mode = #tpu.pipeline_mode<synchronous>, transform_indices = @transform_2, window_bounds = array<i64: 64, 1>}, {pipeline_mode = #tpu.pipeline_mode<synchronous>, transform_indices = @transform_3, window_bounds = array<i64: 2, 64>}, {pipeline_mode = #tpu.pipeline_mode<synchronous>, transform_indices = @transform_4, window_bounds = array<i64: 64, 2>}, {pipeline_mode = #tpu.pipeline_mode<synchronous>, transform_indices = @transform_5, window_bounds = array<i64: 2, 64, 32>}, {pipeline_mode = #tpu.pipeline_mode<synchronous>, transform_indices = @transform_6, window_bounds = array<i64: 2, 1, 32>}, {pipeline_mode = #tpu.pipeline_mode<synchronous>, transform_indices = @transform_7, window_bounds = array<i64: 2, 3, 1, 32>}, {pipeline_mode = #tpu.pipeline_mode<synchronous>, transform_indices = @transform_8, window_bounds = array<i64: 2, 1, 32>}, {pipeline_mode = #tpu.pipeline_mode<synchronous>, transform_indices = @transform_9, window_bounds = array<i64: 2, 32, 64>}, {pipeline_mode = #tpu.pipeline_mode<synchronous>, transform_indices = @transform_10, window_bounds = array<i64: 2, 1, 64>}, {pipeline_mode = #tpu.pipeline_mode<synchronous>, transform_indices = @transform_11, window_bounds = array<i64: 2, 64, 4>}, {pipeline_mode = #tpu.pipeline_mode<synchronous>, transform_indices = @transform_12, window_bounds = array<i64: 2, 1, 4>}, {pipeline_mode = #tpu.pipeline_mode<synchronous>, transform_indices = @transform_13, window_bounds = array<i64: 2, 4, 64>}, {pipeline_mode = #tpu.pipeline_mode<synchronous>, transform_indices = @transform_14, window_bounds = array<i64: 2, 1, 64>}, {transform_indices = @transform_15, window_bounds = array<i64: 64, 64>}]} {
    %c0 = arith.constant 0 : index
    %c0_0 = arith.constant 0 : index
    %0 = vector.load %arg2[%c0, %c0_0] : memref<64x1xf32, #tpu.memory_space<vmem>>, vector<64x1xf32>
    %c0_1 = arith.constant 0 : index
    %c0_2 = arith.constant 0 : index
    %1 = vector.load %arg3[%c0_1, %c0_2] : memref<64x1xf32, #tpu.memory_space<vmem>>, vector<64x1xf32>
    %c0_3 = arith.constant 0 : index
    %c0_4 = arith.constant 0 : index
    %2 = vector.load %arg4[%c0_3, %c0_4] : memref<2x64xbf16, #tpu.memory_space<vmem>>, vector<2x64xbf16>
    %c0_5 = arith.constant 0 : index
    %c0_6 = arith.constant 0 : index
    %3 = vector.load %arg5[%c0_5, %c0_6] : memref<64x2xbf16, #tpu.memory_space<vmem>>, vector<64x2xbf16>
    %c0_7 = arith.constant 0 : index
    %c0_8 = arith.constant 0 : index
    %4 = vector.load %arg1[%c0_7, %c0_8] : memref<64x64xbf16, #tpu.memory_space<vmem>>, vector<64x64xbf16>
    %c0_9 = arith.constant 0 : index
    %c0_10 = arith.constant 0 : index
    %c0_11 = arith.constant 0 : index
    %5 = vector.load %arg6[%c0_9, %c0_10, %c0_11] : memref<2x64x32xbf16, #tpu.memory_space<vmem>>, vector<1x64x32xbf16>
    %6 = vector.shape_cast %5 : vector<1x64x32xbf16> to vector<64x32xbf16>
    %cst = arith.constant dense<0.000000e+00> : vector<64x32xf32>
    %7 = tpu.matmul %4, %6, %cst {dimension_numbers = #tpu.dot_dimension_numbers<[1], [0], [0], [1], [0, 0, 1, 1], [], []>} : vector<64x64xbf16>, vector<64x32xbf16>, vector<64x32xf32> -> vector<64x32xf32>
    %c0_12 = arith.constant 0 : index
    %c0_13 = arith.constant 0 : index
    %c0_14 = arith.constant 0 : index
    %8 = vector.load %arg7[%c0_12, %c0_13, %c0_14] : memref<2x1x32xf32, #tpu.memory_space<vmem>>, vector<1x1x32xf32>
    %9 = vector.shape_cast %8 : vector<1x1x32xf32> to vector<1x32xf32>
    %10 = vector.broadcast %9 : vector<1x32xf32> to vector<64x32xf32>
    %11 = arith.addf %7, %10 : vector<64x32xf32>
    %cst_15 = arith.constant 0.000000e+00 : f32
    %12 = vector.broadcast %cst_15 : f32 to vector<64x32xf32>
    %13 = arith.maximumf %11, %12 : vector<64x32xf32>
    %c0_16 = arith.constant 0 : index
    %c0_17 = arith.constant 0 : index
    %c0_18 = arith.constant 0 : index
    %c0_19 = arith.constant 0 : index
    %14 = vector.load %arg8[%c0_16, %c0_17, %c0_18, %c0_19] : memref<2x3x1x32xf32, #tpu.memory_space<vmem>>, vector<1x3x1x32xf32>
    %15 = vector.shape_cast %14 : vector<1x3x1x32xf32> to vector<3x1x32xf32>
    %c1_i32 = arith.constant 1 : i32
    %16 = tpu.dynamic_rotate %13 by %c1_i32 dim 0 : vector<64x32xf32>, i32 -> vector<64x32xf32>
    %17 = vector.broadcast %0 : vector<64x1xf32> to vector<64x32xf32>
    %18 = arith.mulf %16, %17 : vector<64x32xf32>
    %c63_i32 = arith.constant 63 : i32
    %19 = tpu.dynamic_rotate %13 by %c63_i32 dim 0 : vector<64x32xf32>, i32 -> vector<64x32xf32>
    %20 = vector.broadcast %1 : vector<64x1xf32> to vector<64x32xf32>
    %21 = arith.mulf %19, %20 : vector<64x32xf32>
    %22 = vector.extract_strided_slice %15 {offsets = [0, 0, 0], sizes = [1, 1, 32], strides = [1, 1, 1]} : vector<3x1x32xf32> to vector<1x1x32xf32>
    %23 = vector.shape_cast %22 : vector<1x1x32xf32> to vector<1x32xf32>
    %24 = vector.broadcast %23 : vector<1x32xf32> to vector<64x32xf32>
    %25 = arith.mulf %18, %24 : vector<64x32xf32>
    %26 = vector.extract_strided_slice %15 {offsets = [1, 0, 0], sizes = [1, 1, 32], strides = [1, 1, 1]} : vector<3x1x32xf32> to vector<1x1x32xf32>
    %27 = vector.shape_cast %26 : vector<1x1x32xf32> to vector<1x32xf32>
    %28 = vector.broadcast %27 : vector<1x32xf32> to vector<64x32xf32>
    %29 = arith.mulf %13, %28 : vector<64x32xf32>
    %30 = arith.addf %25, %29 : vector<64x32xf32>
    %31 = vector.extract_strided_slice %15 {offsets = [2, 0, 0], sizes = [1, 1, 32], strides = [1, 1, 1]} : vector<3x1x32xf32> to vector<1x1x32xf32>
    %32 = vector.shape_cast %31 : vector<1x1x32xf32> to vector<1x32xf32>
    %33 = vector.broadcast %32 : vector<1x32xf32> to vector<64x32xf32>
    %34 = arith.mulf %21, %33 : vector<64x32xf32>
    %35 = arith.addf %30, %34 : vector<64x32xf32>
    %c0_20 = arith.constant 0 : index
    %c0_21 = arith.constant 0 : index
    %c0_22 = arith.constant 0 : index
    %36 = vector.load %arg9[%c0_20, %c0_21, %c0_22] : memref<2x1x32xf32, #tpu.memory_space<vmem>>, vector<1x1x32xf32>
    %37 = vector.shape_cast %36 : vector<1x1x32xf32> to vector<1x32xf32>
    %38 = vector.broadcast %37 : vector<1x32xf32> to vector<64x32xf32>
    %39 = arith.addf %35, %38 : vector<64x32xf32>
    %cst_23 = arith.constant 0.000000e+00 : f32
    %40 = vector.broadcast %cst_23 : f32 to vector<64x32xf32>
    %41 = arith.maximumf %39, %40 : vector<64x32xf32>
    %42 = arith.truncf %41 : vector<64x32xf32> to vector<64x32xbf16>
    %c0_24 = arith.constant 0 : index
    %c0_25 = arith.constant 0 : index
    %c0_26 = arith.constant 0 : index
    %43 = vector.load %arg10[%c0_24, %c0_25, %c0_26] : memref<2x32x64xbf16, #tpu.memory_space<vmem>>, vector<1x32x64xbf16>
    %44 = vector.shape_cast %43 : vector<1x32x64xbf16> to vector<32x64xbf16>
    %cst_27 = arith.constant dense<0.000000e+00> : vector<64x64xf32>
    %45 = tpu.matmul %42, %44, %cst_27 {dimension_numbers = #tpu.dot_dimension_numbers<[1], [0], [0], [1], [0, 0, 1, 1], [], []>} : vector<64x32xbf16>, vector<32x64xbf16>, vector<64x64xf32> -> vector<64x64xf32>
    %c0_28 = arith.constant 0 : index
    %c0_29 = arith.constant 0 : index
    %c0_30 = arith.constant 0 : index
    %46 = vector.load %arg11[%c0_28, %c0_29, %c0_30] : memref<2x1x64xf32, #tpu.memory_space<vmem>>, vector<1x1x64xf32>
    %47 = vector.shape_cast %46 : vector<1x1x64xf32> to vector<1x64xf32>
    %48 = vector.broadcast %47 : vector<1x64xf32> to vector<64x64xf32>
    %49 = arith.addf %45, %48 : vector<64x64xf32>
    %50 = arith.truncf %49 : vector<64x64xf32> to vector<64x64xbf16>
    %cst_31 = arith.constant dense<0.000000e+00> : vector<2x64xf32>
    %51 = tpu.matmul %2, %50, %cst_31 {dimension_numbers = #tpu.dot_dimension_numbers<[1], [0], [0], [1], [0, 0, 1, 1], [], []>} : vector<2x64xbf16>, vector<64x64xbf16>, vector<2x64xf32> -> vector<2x64xf32>
    %52 = arith.truncf %51 : vector<2x64xf32> to vector<2x64xbf16>
    %c0_32 = arith.constant 0 : index
    %c0_33 = arith.constant 0 : index
    %c0_34 = arith.constant 0 : index
    %53 = vector.load %arg12[%c0_32, %c0_33, %c0_34] : memref<2x64x4xbf16, #tpu.memory_space<vmem>>, vector<1x64x4xbf16>
    %54 = vector.shape_cast %53 : vector<1x64x4xbf16> to vector<64x4xbf16>
    %cst_35 = arith.constant dense<0.000000e+00> : vector<2x4xf32>
    %55 = tpu.matmul %52, %54, %cst_35 {dimension_numbers = #tpu.dot_dimension_numbers<[1], [0], [0], [1], [0, 0, 1, 1], [], []>} : vector<2x64xbf16>, vector<64x4xbf16>, vector<2x4xf32> -> vector<2x4xf32>
    %c0_36 = arith.constant 0 : index
    %c0_37 = arith.constant 0 : index
    %c0_38 = arith.constant 0 : index
    %56 = vector.load %arg13[%c0_36, %c0_37, %c0_38] : memref<2x1x4xf32, #tpu.memory_space<vmem>>, vector<1x1x4xf32>
    %57 = vector.shape_cast %56 : vector<1x1x4xf32> to vector<1x4xf32>
    %58 = vector.broadcast %57 : vector<1x4xf32> to vector<2x4xf32>
    %59 = arith.addf %55, %58 : vector<2x4xf32>
    %cst_39 = arith.constant 0.000000e+00 : f32
    %60 = vector.broadcast %cst_39 : f32 to vector<2x4xf32>
    %61 = arith.maximumf %59, %60 : vector<2x4xf32>
    %62 = arith.truncf %61 : vector<2x4xf32> to vector<2x4xbf16>
    %c0_40 = arith.constant 0 : index
    %c0_41 = arith.constant 0 : index
    %c0_42 = arith.constant 0 : index
    %63 = vector.load %arg14[%c0_40, %c0_41, %c0_42] : memref<2x4x64xbf16, #tpu.memory_space<vmem>>, vector<1x4x64xbf16>
    %64 = vector.shape_cast %63 : vector<1x4x64xbf16> to vector<4x64xbf16>
    %cst_43 = arith.constant dense<0.000000e+00> : vector<2x64xf32>
    %65 = tpu.matmul %62, %64, %cst_43 {dimension_numbers = #tpu.dot_dimension_numbers<[1], [0], [0], [1], [0, 0, 1, 1], [], []>} : vector<2x4xbf16>, vector<4x64xbf16>, vector<2x64xf32> -> vector<2x64xf32>
    %c0_44 = arith.constant 0 : index
    %c0_45 = arith.constant 0 : index
    %c0_46 = arith.constant 0 : index
    %66 = vector.load %arg15[%c0_44, %c0_45, %c0_46] : memref<2x1x64xf32, #tpu.memory_space<vmem>>, vector<1x1x64xf32>
    %67 = vector.shape_cast %66 : vector<1x1x64xf32> to vector<1x64xf32>
    %68 = vector.broadcast %67 : vector<1x64xf32> to vector<2x64xf32>
    %69 = arith.addf %65, %68 : vector<2x64xf32>
    %70 = arith.negf %69 : vector<2x64xf32>
    %71 = math.exp %70 : vector<2x64xf32>
    %cst_47 = arith.constant 1.000000e+00 : f32
    %72 = vector.broadcast %cst_47 : f32 to vector<2x64xf32>
    %73 = arith.addf %72, %71 : vector<2x64xf32>
    %74 = arith.divf %72, %73 : vector<2x64xf32>
    %75 = arith.truncf %74 : vector<2x64xf32> to vector<2x64xbf16>
    %cst_48 = arith.constant dense<0.000000e+00> : vector<64x64xf32>
    %76 = tpu.matmul %3, %75, %cst_48 {dimension_numbers = #tpu.dot_dimension_numbers<[1], [0], [0], [1], [0, 0, 1, 1], [], []>} : vector<64x2xbf16>, vector<2x64xbf16>, vector<64x64xf32> -> vector<64x64xf32>
    %77 = arith.extf %4 : vector<64x64xbf16> to vector<64x64xf32>
    %78 = arith.addf %77, %49 : vector<64x64xf32>
    %79 = arith.addf %78, %76 : vector<64x64xf32>
    %cst_49 = arith.constant 0.000000e+00 : f32
    %80 = vector.broadcast %cst_49 : f32 to vector<64x64xf32>
    %81 = arith.maximumf %79, %80 : vector<64x64xf32>
    %82 = arith.truncf %81 : vector<64x64xf32> to vector<64x64xbf16>
    %c1 = arith.constant 1 : index
    %c0_50 = arith.constant 0 : index
    %c0_51 = arith.constant 0 : index
    %83 = vector.load %arg6[%c1, %c0_50, %c0_51] : memref<2x64x32xbf16, #tpu.memory_space<vmem>>, vector<1x64x32xbf16>
    %84 = vector.shape_cast %83 : vector<1x64x32xbf16> to vector<64x32xbf16>
    %cst_52 = arith.constant dense<0.000000e+00> : vector<64x32xf32>
    %85 = tpu.matmul %82, %84, %cst_52 {dimension_numbers = #tpu.dot_dimension_numbers<[1], [0], [0], [1], [0, 0, 1, 1], [], []>} : vector<64x64xbf16>, vector<64x32xbf16>, vector<64x32xf32> -> vector<64x32xf32>
    %c1_53 = arith.constant 1 : index
    %c0_54 = arith.constant 0 : index
    %c0_55 = arith.constant 0 : index
    %86 = vector.load %arg7[%c1_53, %c0_54, %c0_55] : memref<2x1x32xf32, #tpu.memory_space<vmem>>, vector<1x1x32xf32>
    %87 = vector.shape_cast %86 : vector<1x1x32xf32> to vector<1x32xf32>
    %88 = vector.broadcast %87 : vector<1x32xf32> to vector<64x32xf32>
    %89 = arith.addf %85, %88 : vector<64x32xf32>
    %cst_56 = arith.constant 0.000000e+00 : f32
    %90 = vector.broadcast %cst_56 : f32 to vector<64x32xf32>
    %91 = arith.maximumf %89, %90 : vector<64x32xf32>
    %c1_57 = arith.constant 1 : index
    %c0_58 = arith.constant 0 : index
    %c0_59 = arith.constant 0 : index
    %c0_60 = arith.constant 0 : index
    %92 = vector.load %arg8[%c1_57, %c0_58, %c0_59, %c0_60] : memref<2x3x1x32xf32, #tpu.memory_space<vmem>>, vector<1x3x1x32xf32>
    %93 = vector.shape_cast %92 : vector<1x3x1x32xf32> to vector<3x1x32xf32>
    %c1_i32_61 = arith.constant 1 : i32
    %94 = tpu.dynamic_rotate %91 by %c1_i32_61 dim 0 : vector<64x32xf32>, i32 -> vector<64x32xf32>
    %95 = vector.broadcast %0 : vector<64x1xf32> to vector<64x32xf32>
    %96 = arith.mulf %94, %95 : vector<64x32xf32>
    %c63_i32_62 = arith.constant 63 : i32
    %97 = tpu.dynamic_rotate %91 by %c63_i32_62 dim 0 : vector<64x32xf32>, i32 -> vector<64x32xf32>
    %98 = vector.broadcast %1 : vector<64x1xf32> to vector<64x32xf32>
    %99 = arith.mulf %97, %98 : vector<64x32xf32>
    %100 = vector.extract_strided_slice %93 {offsets = [0, 0, 0], sizes = [1, 1, 32], strides = [1, 1, 1]} : vector<3x1x32xf32> to vector<1x1x32xf32>
    %101 = vector.shape_cast %100 : vector<1x1x32xf32> to vector<1x32xf32>
    %102 = vector.broadcast %101 : vector<1x32xf32> to vector<64x32xf32>
    %103 = arith.mulf %96, %102 : vector<64x32xf32>
    %104 = vector.extract_strided_slice %93 {offsets = [1, 0, 0], sizes = [1, 1, 32], strides = [1, 1, 1]} : vector<3x1x32xf32> to vector<1x1x32xf32>
    %105 = vector.shape_cast %104 : vector<1x1x32xf32> to vector<1x32xf32>
    %106 = vector.broadcast %105 : vector<1x32xf32> to vector<64x32xf32>
    %107 = arith.mulf %91, %106 : vector<64x32xf32>
    %108 = arith.addf %103, %107 : vector<64x32xf32>
    %109 = vector.extract_strided_slice %93 {offsets = [2, 0, 0], sizes = [1, 1, 32], strides = [1, 1, 1]} : vector<3x1x32xf32> to vector<1x1x32xf32>
    %110 = vector.shape_cast %109 : vector<1x1x32xf32> to vector<1x32xf32>
    %111 = vector.broadcast %110 : vector<1x32xf32> to vector<64x32xf32>
    %112 = arith.mulf %99, %111 : vector<64x32xf32>
    %113 = arith.addf %108, %112 : vector<64x32xf32>
    %c1_63 = arith.constant 1 : index
    %c0_64 = arith.constant 0 : index
    %c0_65 = arith.constant 0 : index
    %114 = vector.load %arg9[%c1_63, %c0_64, %c0_65] : memref<2x1x32xf32, #tpu.memory_space<vmem>>, vector<1x1x32xf32>
    %115 = vector.shape_cast %114 : vector<1x1x32xf32> to vector<1x32xf32>
    %116 = vector.broadcast %115 : vector<1x32xf32> to vector<64x32xf32>
    %117 = arith.addf %113, %116 : vector<64x32xf32>
    %cst_66 = arith.constant 0.000000e+00 : f32
    %118 = vector.broadcast %cst_66 : f32 to vector<64x32xf32>
    %119 = arith.maximumf %117, %118 : vector<64x32xf32>
    %120 = arith.truncf %119 : vector<64x32xf32> to vector<64x32xbf16>
    %c1_67 = arith.constant 1 : index
    %c0_68 = arith.constant 0 : index
    %c0_69 = arith.constant 0 : index
    %121 = vector.load %arg10[%c1_67, %c0_68, %c0_69] : memref<2x32x64xbf16, #tpu.memory_space<vmem>>, vector<1x32x64xbf16>
    %122 = vector.shape_cast %121 : vector<1x32x64xbf16> to vector<32x64xbf16>
    %cst_70 = arith.constant dense<0.000000e+00> : vector<64x64xf32>
    %123 = tpu.matmul %120, %122, %cst_70 {dimension_numbers = #tpu.dot_dimension_numbers<[1], [0], [0], [1], [0, 0, 1, 1], [], []>} : vector<64x32xbf16>, vector<32x64xbf16>, vector<64x64xf32> -> vector<64x64xf32>
    %c1_71 = arith.constant 1 : index
    %c0_72 = arith.constant 0 : index
    %c0_73 = arith.constant 0 : index
    %124 = vector.load %arg11[%c1_71, %c0_72, %c0_73] : memref<2x1x64xf32, #tpu.memory_space<vmem>>, vector<1x1x64xf32>
    %125 = vector.shape_cast %124 : vector<1x1x64xf32> to vector<1x64xf32>
    %126 = vector.broadcast %125 : vector<1x64xf32> to vector<64x64xf32>
    %127 = arith.addf %123, %126 : vector<64x64xf32>
    %128 = arith.truncf %127 : vector<64x64xf32> to vector<64x64xbf16>
    %cst_74 = arith.constant dense<0.000000e+00> : vector<2x64xf32>
    %129 = tpu.matmul %2, %128, %cst_74 {dimension_numbers = #tpu.dot_dimension_numbers<[1], [0], [0], [1], [0, 0, 1, 1], [], []>} : vector<2x64xbf16>, vector<64x64xbf16>, vector<2x64xf32> -> vector<2x64xf32>
    %130 = arith.truncf %129 : vector<2x64xf32> to vector<2x64xbf16>
    %c1_75 = arith.constant 1 : index
    %c0_76 = arith.constant 0 : index
    %c0_77 = arith.constant 0 : index
    %131 = vector.load %arg12[%c1_75, %c0_76, %c0_77] : memref<2x64x4xbf16, #tpu.memory_space<vmem>>, vector<1x64x4xbf16>
    %132 = vector.shape_cast %131 : vector<1x64x4xbf16> to vector<64x4xbf16>
    %cst_78 = arith.constant dense<0.000000e+00> : vector<2x4xf32>
    %133 = tpu.matmul %130, %132, %cst_78 {dimension_numbers = #tpu.dot_dimension_numbers<[1], [0], [0], [1], [0, 0, 1, 1], [], []>} : vector<2x64xbf16>, vector<64x4xbf16>, vector<2x4xf32> -> vector<2x4xf32>
    %c1_79 = arith.constant 1 : index
    %c0_80 = arith.constant 0 : index
    %c0_81 = arith.constant 0 : index
    %134 = vector.load %arg13[%c1_79, %c0_80, %c0_81] : memref<2x1x4xf32, #tpu.memory_space<vmem>>, vector<1x1x4xf32>
    %135 = vector.shape_cast %134 : vector<1x1x4xf32> to vector<1x4xf32>
    %136 = vector.broadcast %135 : vector<1x4xf32> to vector<2x4xf32>
    %137 = arith.addf %133, %136 : vector<2x4xf32>
    %cst_82 = arith.constant 0.000000e+00 : f32
    %138 = vector.broadcast %cst_82 : f32 to vector<2x4xf32>
    %139 = arith.maximumf %137, %138 : vector<2x4xf32>
    %140 = arith.truncf %139 : vector<2x4xf32> to vector<2x4xbf16>
    %c1_83 = arith.constant 1 : index
    %c0_84 = arith.constant 0 : index
    %c0_85 = arith.constant 0 : index
    %141 = vector.load %arg14[%c1_83, %c0_84, %c0_85] : memref<2x4x64xbf16, #tpu.memory_space<vmem>>, vector<1x4x64xbf16>
    %142 = vector.shape_cast %141 : vector<1x4x64xbf16> to vector<4x64xbf16>
    %cst_86 = arith.constant dense<0.000000e+00> : vector<2x64xf32>
    %143 = tpu.matmul %140, %142, %cst_86 {dimension_numbers = #tpu.dot_dimension_numbers<[1], [0], [0], [1], [0, 0, 1, 1], [], []>} : vector<2x4xbf16>, vector<4x64xbf16>, vector<2x64xf32> -> vector<2x64xf32>
    %c1_87 = arith.constant 1 : index
    %c0_88 = arith.constant 0 : index
    %c0_89 = arith.constant 0 : index
    %144 = vector.load %arg15[%c1_87, %c0_88, %c0_89] : memref<2x1x64xf32, #tpu.memory_space<vmem>>, vector<1x1x64xf32>
    %145 = vector.shape_cast %144 : vector<1x1x64xf32> to vector<1x64xf32>
    %146 = vector.broadcast %145 : vector<1x64xf32> to vector<2x64xf32>
    %147 = arith.addf %143, %146 : vector<2x64xf32>
    %148 = arith.negf %147 : vector<2x64xf32>
    %149 = math.exp %148 : vector<2x64xf32>
    %cst_90 = arith.constant 1.000000e+00 : f32
    %150 = vector.broadcast %cst_90 : f32 to vector<2x64xf32>
    %151 = arith.addf %150, %149 : vector<2x64xf32>
    %152 = arith.divf %150, %151 : vector<2x64xf32>
    %153 = arith.truncf %152 : vector<2x64xf32> to vector<2x64xbf16>
    %cst_91 = arith.constant dense<0.000000e+00> : vector<64x64xf32>
    %154 = tpu.matmul %3, %153, %cst_91 {dimension_numbers = #tpu.dot_dimension_numbers<[1], [0], [0], [1], [0, 0, 1, 1], [], []>} : vector<64x2xbf16>, vector<2x64xbf16>, vector<64x64xf32> -> vector<64x64xf32>
    %155 = arith.extf %82 : vector<64x64xbf16> to vector<64x64xf32>
    %156 = arith.addf %155, %127 : vector<64x64xf32>
    %157 = arith.addf %156, %154 : vector<64x64xf32>
    %cst_92 = arith.constant 0.000000e+00 : f32
    %158 = vector.broadcast %cst_92 : f32 to vector<64x64xf32>
    %159 = arith.maximumf %157, %158 : vector<64x64xf32>
    %160 = arith.truncf %159 : vector<64x64xf32> to vector<64x64xbf16>
    %c0_93 = arith.constant 0 : index
    %c0_94 = arith.constant 0 : index
    %161 = vector.load %arg16[%c0_93, %c0_94] : memref<64x64xbf16, #tpu.memory_space<vmem>>, vector<64x64xbf16>
    tpu.vector_store %arg16[%c0_93, %c0_94], %160 {strides = array<i32>} : memref<64x64xbf16, #tpu.memory_space<vmem>>, vector<64x64xbf16>,
    return
  }
  func.func @transform_0(%arg0: i32) -> (i32, i32) {
    %c0_i32 = arith.constant 0 : i32
    %c0_i32_0 = arith.constant 0 : i32
    return %arg0, %c0_i32 : i32, i32
  }
  func.func @transform_1(%arg0: i32) -> (i32, i32) {
    %c0_i32 = arith.constant 0 : i32
    %c0_i32_0 = arith.constant 0 : i32
    %c0_i32_1 = arith.constant 0 : i32
    return %c0_i32, %c0_i32_0 : i32, i32
  }
  func.func @transform_2(%arg0: i32) -> (i32, i32) {
    %c0_i32 = arith.constant 0 : i32
    %c0_i32_0 = arith.constant 0 : i32
    %c0_i32_1 = arith.constant 0 : i32
    return %c0_i32, %c0_i32_0 : i32, i32
  }
  func.func @transform_3(%arg0: i32) -> (i32, i32) {
    %c0_i32 = arith.constant 0 : i32
    %c0_i32_0 = arith.constant 0 : i32
    %c0_i32_1 = arith.constant 0 : i32
    return %c0_i32, %c0_i32_0 : i32, i32
  }
  func.func @transform_4(%arg0: i32) -> (i32, i32) {
    %c0_i32 = arith.constant 0 : i32
    %c0_i32_0 = arith.constant 0 : i32
    %c0_i32_1 = arith.constant 0 : i32
    return %c0_i32, %c0_i32_0 : i32, i32
  }
  func.func @transform_5(%arg0: i32) -> (i32, i32, i32) {
    %c0_i32 = arith.constant 0 : i32
    %c0_i32_0 = arith.constant 0 : i32
    %c0_i32_1 = arith.constant 0 : i32
    %c0_i32_2 = arith.constant 0 : i32
    return %c0_i32, %c0_i32_0, %c0_i32_1 : i32, i32, i32
  }
  func.func @transform_6(%arg0: i32) -> (i32, i32, i32) {
    %c0_i32 = arith.constant 0 : i32
    %c0_i32_0 = arith.constant 0 : i32
    %c0_i32_1 = arith.constant 0 : i32
    %c0_i32_2 = arith.constant 0 : i32
    return %c0_i32, %c0_i32_0, %c0_i32_1 : i32, i32, i32
  }
  func.func @transform_7(%arg0: i32) -> (i32, i32, i32, i32) {
    %c0_i32 = arith.constant 0 : i32
    %c0_i32_0 = arith.constant 0 : i32
    %c0_i32_1 = arith.constant 0 : i32
    %c0_i32_2 = arith.constant 0 : i32
    %c0_i32_3 = arith.constant 0 : i32
    return %c0_i32, %c0_i32_0, %c0_i32_1, %c0_i32_2 : i32, i32, i32, i32
  }
  func.func @transform_8(%arg0: i32) -> (i32, i32, i32) {
    %c0_i32 = arith.constant 0 : i32
    %c0_i32_0 = arith.constant 0 : i32
    %c0_i32_1 = arith.constant 0 : i32
    %c0_i32_2 = arith.constant 0 : i32
    return %c0_i32, %c0_i32_0, %c0_i32_1 : i32, i32, i32
  }
  func.func @transform_9(%arg0: i32) -> (i32, i32, i32) {
    %c0_i32 = arith.constant 0 : i32
    %c0_i32_0 = arith.constant 0 : i32
    %c0_i32_1 = arith.constant 0 : i32
    %c0_i32_2 = arith.constant 0 : i32
    return %c0_i32, %c0_i32_0, %c0_i32_1 : i32, i32, i32
  }
  func.func @transform_10(%arg0: i32) -> (i32, i32, i32) {
    %c0_i32 = arith.constant 0 : i32
    %c0_i32_0 = arith.constant 0 : i32
    %c0_i32_1 = arith.constant 0 : i32
    %c0_i32_2 = arith.constant 0 : i32
    return %c0_i32, %c0_i32_0, %c0_i32_1 : i32, i32, i32
  }
  func.func @transform_11(%arg0: i32) -> (i32, i32, i32) {
    %c0_i32 = arith.constant 0 : i32
    %c0_i32_0 = arith.constant 0 : i32
    %c0_i32_1 = arith.constant 0 : i32
    %c0_i32_2 = arith.constant 0 : i32
    return %c0_i32, %c0_i32_0, %c0_i32_1 : i32, i32, i32
  }
  func.func @transform_12(%arg0: i32) -> (i32, i32, i32) {
    %c0_i32 = arith.constant 0 : i32
    %c0_i32_0 = arith.constant 0 : i32
    %c0_i32_1 = arith.constant 0 : i32
    %c0_i32_2 = arith.constant 0 : i32
    return %c0_i32, %c0_i32_0, %c0_i32_1 : i32, i32, i32
  }
  func.func @transform_13(%arg0: i32) -> (i32, i32, i32) {
    %c0_i32 = arith.constant 0 : i32
    %c0_i32_0 = arith.constant 0 : i32
    %c0_i32_1 = arith.constant 0 : i32
    %c0_i32_2 = arith.constant 0 : i32
    return %c0_i32, %c0_i32_0, %c0_i32_1 : i32, i32, i32
  }
  func.func @transform_14(%arg0: i32) -> (i32, i32, i32) {
    %c0_i32 = arith.constant 0 : i32
    %c0_i32_0 = arith.constant 0 : i32
    %c0_i32_1 = arith.constant 0 : i32
    %c0_i32_2 = arith.constant 0 : i32
    return %c0_i32, %c0_i32_0, %c0_i32_1 : i32, i32, i32
  }
  func.func @transform_15(%arg0: i32) -> (i32, i32) {
    %c0_i32 = arith.constant 0 : i32
    %c0_i32_0 = arith.constant 0 : i32
    return %arg0, %c0_i32 : i32, i32
  }
}

</mosaic_0001>

<llo_original>
// kernel: tpu_custom_call.1
$region0: #{tpu_custom_call.1}
  #allocation0 [shape = 'u32[]', space=smem, size = 0x4, offset = 0x4, fixed_abs, tag = 'smem constant byte address 0x4 - core index']
  #allocation1 [shape = 'u32[144,128]{1,0:T(1,128)}', space=vmem, size = 0x12000, scoped, tag = 'internal scratch']
  %s0 = inlined_call_operand.vmem [shape: bf16[512,64], index: 0, kind: input, shape index: {}]
  %s1 = inlined_call_operand.vmem [shape: f32[64,1], index: 1, kind: input, shape index: {}]
  %s2 = inlined_call_operand.vmem [shape: f32[64,1], index: 2, kind: input, shape index: {}]
  %s3 = inlined_call_operand.vmem [shape: bf16[2,64], index: 3, kind: input, shape index: {}]
  %s4 = inlined_call_operand.vmem [shape: bf16[64,2], index: 4, kind: input, shape index: {}]
  %s5 = inlined_call_operand.vmem [shape: bf16[2,64,32], index: 5, kind: input, shape index: {}]
  %s6 = inlined_call_operand.vmem [shape: f32[2,1,32], index: 6, kind: input, shape index: {}]
  %s7 = inlined_call_operand.vmem [shape: f32[2,3,1,32], index: 7, kind: input, shape index: {}]
  %s8 = inlined_call_operand.vmem [shape: f32[2,1,32], index: 8, kind: input, shape index: {}]
  %s9 = inlined_call_operand.vmem [shape: bf16[2,32,64], index: 9, kind: input, shape index: {}]
  %s10 = inlined_call_operand.vmem [shape: f32[2,1,64], index: 10, kind: input, shape index: {}]
  %s11 = inlined_call_operand.vmem [shape: bf16[2,64,4], index: 11, kind: input, shape index: {}]
  %s12 = inlined_call_operand.vmem [shape: f32[2,1,4], index: 12, kind: input, shape index: {}]
  %s13 = inlined_call_operand.vmem [shape: bf16[2,4,64], index: 13, kind: input, shape index: {}]
  %s14 = inlined_call_operand.vmem [shape: f32[2,1,64], index: 14, kind: input, shape index: {}]
  %s15 = inlined_call_operand.vmem [shape: bf16[512,64], index: 15, kind: output, shape index: {}]
  %s16 = sld [smem:[#allocation0]]
  $region93: #{tpu_custom_call.1} parent=0
    _
  %s18 = ssub.s32 1, %s16
  %s19 = scalar_select 0, %s18, %s16
  loop: start=0, step=1, limit=10
  $region2: #{tpu_custom_call.1} parent=0 // loop_pre_header
    _
  $region3: #{tpu_custom_call.1} parent=0 // loop_header
    %s21 = sphi 0, %s25
    %p22 = scmp.ge.s32.totalorder %s21, 10
    %s31 = sphi 0, %s33
    %s34 = sphi 0, %s31
    %s35 = sphi 0, %s34
    %s51 = sphi 0, %s35
    %s55 = sphi 0, %s55
    %s57 = sphi 0, %s55
    %s58 = sphi 0, %s57
    %s72 = sphi 0, %s58
    %s76 = sphi 0, %s76
    %s78 = sphi 0, %s76
    %s79 = sphi 0, %s78
    %s93 = sphi 0, %s79
    %s97 = sphi 0, %s97
    %s99 = sphi 0, %s97
    %s100 = sphi 0, %s99
    %s114 = sphi 0, %s100
    %s118 = sphi 0, %s118
    %s120 = sphi 0, %s118
    %s121 = sphi 0, %s120
    %s135 = sphi 0, %s121
    %s139 = sphi 0, %s139
    %s141 = sphi 0, %s139
    %s142 = sphi 0, %s141
    %s156 = sphi 0, %s142
    %s160 = sphi 0, %s160
    %s162 = sphi 0, %s160
    %s163 = sphi 0, %s162
    %s177 = sphi 0, %s163
    %s181 = sphi 0, %s181
    %s183 = sphi 0, %s181
    %s184 = sphi 0, %s183
    %s198 = sphi 0, %s184
    %s202 = sphi 0, %s202
    %s204 = sphi 0, %s202
    %s205 = sphi 0, %s204
    %s219 = sphi 0, %s205
    %s223 = sphi 0, %s223
    %s225 = sphi 0, %s223
    %s226 = sphi 0, %s225
    %s240 = sphi 0, %s226
    %s244 = sphi 0, %s244
    %s246 = sphi 0, %s244
    %s247 = sphi 0, %s246
    %s261 = sphi 0, %s247
    %s265 = sphi 0, %s265
    %s267 = sphi 0, %s265
    %s268 = sphi 0, %s267
    %s282 = sphi 0, %s268
    %s286 = sphi 0, %s286
    %s288 = sphi 0, %s286
    %s289 = sphi 0, %s288
    %s303 = sphi 0, %s289
    %s307 = sphi 0, %s307
    %s309 = sphi 0, %s307
    %s310 = sphi 0, %s309
    %s324 = sphi 0, %s310
    %s328 = sphi 0, %s328
    %s330 = sphi 0, %s328
    %s331 = sphi 0, %s330
    %s345 = sphi 0, %s331
    %s351 = sphi 0, %s353
    %s354 = sphi 0, %s351
    %s355 = sphi 0, %s354
    %s371 = sphi 0, %s355
  $region4: #{tpu_custom_call.1} parent=0 // loop_header_branch
    %24 = sbr.rel (%p22) target = $region8
  $region5: #{tpu_custom_call.1} parent=0 // loop_body
    %s26 = ssub.s32 %s21, 1
    %s27 = ssub.s32 %s21, 2
    %s28 = sadd.s32 %s21, 1
    %s29 = ssub.s32 %s21, %s28
    %p30 = scmp.eq.s32.totalorder %s29, 0
    %s32 = sadd.s32 %s31, 1
    %s33 = scalar_select %p30, %s31, %s32
    %p36 = pneg %p30
    %p37 = scmp.eq.s32.totalorder %s21, 7
    %p38 = por %p36, %p37
    %p39 = scmp.ne.s32.totalorder %s31, %s34
    %p40 = scmp.eq.s32.totalorder %s21, 0
    %p41 = por %p39, %p40
    %p42 = scmp.ne.s32.totalorder %s31, %s34
    %p43 = scmp.eq.s32.totalorder %s26, 7
    %p44 = por %p42, %p43
    %p45 = scmp.ne.s32.totalorder %s34, %s35
    %p46 = scmp.eq.s32.totalorder %s26, 0
    %p47 = por %p45, %p46
    %p48 = scmp.ne.s32.totalorder %s34, %s35
    %p49 = scmp.eq.s32.totalorder %s27, 7
    %p50 = por %p48, %p49
    %p52 = scmp.ne.s32.totalorder %s35, %s51
    %p53 = scmp.eq.s32.totalorder %s27, 0
    %p54 = por %p52, %p53
    %s56 = sadd.s32 %s55, 1
    %p59 = scmp.eq.s32.totalorder %s21, 7
    %p60 = scmp.ne.s32.totalorder %s55, %s57
    %p61 = scmp.eq.s32.totalorder %s21, 0
    %p62 = por %p60, %p61
    %p63 = scmp.ne.s32.totalorder %s55, %s57
    %p64 = scmp.eq.s32.totalorder %s26, 7
    %p65 = por %p63, %p64
    %p66 = scmp.ne.s32.totalorder %s57, %s58
    %p67 = scmp.eq.s32.totalorder %s26, 0
    %p68 = por %p66, %p67
    %p69 = scmp.ne.s32.totalorder %s57, %s58
    %p70 = scmp.eq.s32.totalorder %s27, 7
    %p71 = por %p69, %p70
    %p73 = scmp.ne.s32.totalorder %s58, %s72
    %p74 = scmp.eq.s32.totalorder %s27, 0
    %p75 = por %p73, %p74
    %s77 = sadd.s32 %s76, 1
    %p80 = scmp.eq.s32.totalorder %s21, 7
    %p81 = scmp.ne.s32.totalorder %s76, %s78
    %p82 = scmp.eq.s32.totalorder %s21, 0
    %p83 = por %p81, %p82
    %p84 = scmp.ne.s32.totalorder %s76, %s78
    %p85 = scmp.eq.s32.totalorder %s26, 7
    %p86 = por %p84, %p85
    %p87 = scmp.ne.s32.totalorder %s78, %s79
    %p88 = scmp.eq.s32.totalorder %s26, 0
    %p89 = por %p87, %p88
    %p90 = scmp.ne.s32.totalorder %s78, %s79
    %p91 = scmp.eq.s32.totalorder %s27, 7
    %p92 = por %p90, %p91
    %p94 = scmp.ne.s32.totalorder %s79, %s93
    %p95 = scmp.eq.s32.totalorder %s27, 0
    %p96 = por %p94, %p95
    %s98 = sadd.s32 %s97, 1
    %p101 = scmp.eq.s32.totalorder %s21, 7
    %p102 = scmp.ne.s32.totalorder %s97, %s99
    %p103 = scmp.eq.s32.totalorder %s21, 0
    %p104 = por %p102, %p103
    %p105 = scmp.ne.s32.totalorder %s97, %s99
    %p106 = scmp.eq.s32.totalorder %s26, 7
    %p107 = por %p105, %p106
    %p108 = scmp.ne.s32.totalorder %s99, %s100
    %p109 = scmp.eq.s32.totalorder %s26, 0
    %p110 = por %p108, %p109
    %p111 = scmp.ne.s32.totalorder %s99, %s100
    %p112 = scmp.eq.s32.totalorder %s27, 7
    %p113 = por %p111, %p112
    %p115 = scmp.ne.s32.totalorder %s100, %s114
    %p116 = scmp.eq.s32.totalorder %s27, 0
    %p117 = por %p115, %p116
    %s119 = sadd.s32 %s118, 1
    %p122 = scmp.eq.s32.totalorder %s21, 7
    %p123 = scmp.ne.s32.totalorder %s118, %s120
    %p124 = scmp.eq.s32.totalorder %s21, 0
    %p125 = por %p123, %p124
    %p126 = scmp.ne.s32.totalorder %s118, %s120
    %p127 = scmp.eq.s32.totalorder %s26, 7
    %p128 = por %p126, %p127
    %p129 = scmp.ne.s32.totalorder %s120, %s121
    %p130 = scmp.eq.s32.totalorder %s26, 0
    %p131 = por %p129, %p130
    %p132 = scmp.ne.s32.totalorder %s120, %s121
    %p133 = scmp.eq.s32.totalorder %s27, 7
    %p134 = por %p132, %p133
    %p136 = scmp.ne.s32.totalorder %s121, %s135
    %p137 = scmp.eq.s32.totalorder %s27, 0
    %p138 = por %p136, %p137
    %s140 = sadd.s32 %s139, 1
    %p143 = scmp.eq.s32.totalorder %s21, 7
    %p144 = scmp.ne.s32.totalorder %s139, %s141
    %p145 = scmp.eq.s32.totalorder %s21, 0
    %p146 = por %p144, %p145
    %p147 = scmp.ne.s32.totalorder %s139, %s141
    %p148 = scmp.eq.s32.totalorder %s26, 7
    %p149 = por %p147, %p148
    %p150 = scmp.ne.s32.totalorder %s141, %s142
    %p151 = scmp.eq.s32.totalorder %s26, 0
    %p152 = por %p150, %p151
    %p153 = scmp.ne.s32.totalorder %s141, %s142
    %p154 = scmp.eq.s32.totalorder %s27, 7
    %p155 = por %p153, %p154
    %p157 = scmp.ne.s32.totalorder %s142, %s156
    %p158 = scmp.eq.s32.totalorder %s27, 0
    %p159 = por %p157, %p158
    %s161 = sadd.s32 %s160, 1
    %p164 = scmp.eq.s32.totalorder %s21, 7
    %p165 = scmp.ne.s32.totalorder %s160, %s162
    %p166 = scmp.eq.s32.totalorder %s21, 0
    %p167 = por %p165, %p166
    %p168 = scmp.ne.s32.totalorder %s160, %s162
    %p169 = scmp.eq.s32.totalorder %s26, 7
    %p170 = por %p168, %p169
    %p171 = scmp.ne.s32.totalorder %s162, %s163
    %p172 = scmp.eq.s32.totalorder %s26, 0
    %p173 = por %p171, %p172
    %p174 = scmp.ne.s32.totalorder %s162, %s163
    %p175 = scmp.eq.s32.totalorder %s27, 7
    %p176 = por %p174, %p175
    %p178 = scmp.ne.s32.totalorder %s163, %s177
    %p179 = scmp.eq.s32.totalorder %s27, 0
    %p180 = por %p178, %p179
    %s182 = sadd.s32 %s181, 1
    %p185 = scmp.eq.s32.totalorder %s21, 7
    %p186 = scmp.ne.s32.totalorder %s181, %s183
    %p187 = scmp.eq.s32.totalorder %s21, 0
    %p188 = por %p186, %p187
    %p189 = scmp.ne.s32.totalorder %s181, %s183
    %p190 = scmp.eq.s32.totalorder %s26, 7
    %p191 = por %p189, %p190
    %p192 = scmp.ne.s32.totalorder %s183, %s184
    %p193 = scmp.eq.s32.totalorder %s26, 0
    %p194 = por %p192, %p193
    %p195 = scmp.ne.s32.totalorder %s183, %s184
    %p196 = scmp.eq.s32.totalorder %s27, 7
    %p197 = por %p195, %p196
    %p199 = scmp.ne.s32.totalorder %s184, %s198
    %p200 = scmp.eq.s32.totalorder %s27, 0
    %p201 = por %p199, %p200
    %s203 = sadd.s32 %s202, 1
    %p206 = scmp.eq.s32.totalorder %s21, 7
    %p207 = scmp.ne.s32.totalorder %s202, %s204
    %p208 = scmp.eq.s32.totalorder %s21, 0
    %p209 = por %p207, %p208
    %p210 = scmp.ne.s32.totalorder %s202, %s204
    %p211 = scmp.eq.s32.totalorder %s26, 7
    %p212 = por %p210, %p211
    %p213 = scmp.ne.s32.totalorder %s204, %s205
    %p214 = scmp.eq.s32.totalorder %s26, 0
    %p215 = por %p213, %p214
    %p216 = scmp.ne.s32.totalorder %s204, %s205
    %p217 = scmp.eq.s32.totalorder %s27, 7
    %p218 = por %p216, %p217
    %p220 = scmp.ne.s32.totalorder %s205, %s219
    %p221 = scmp.eq.s32.totalorder %s27, 0
    %p222 = por %p220, %p221
    %s224 = sadd.s32 %s223, 1
    %p227 = scmp.eq.s32.totalorder %s21, 7
    %p228 = scmp.ne.s32.totalorder %s223, %s225
    %p229 = scmp.eq.s32.totalorder %s21, 0
    %p230 = por %p228, %p229
    %p231 = scmp.ne.s32.totalorder %s223, %s225
    %p232 = scmp.eq.s32.totalorder %s26, 7
    %p233 = por %p231, %p232
    %p234 = scmp.ne.s32.totalorder %s225, %s226
    %p235 = scmp.eq.s32.totalorder %s26, 0
    %p236 = por %p234, %p235
    %p237 = scmp.ne.s32.totalorder %s225, %s226
    %p238 = scmp.eq.s32.totalorder %s27, 7
    %p239 = por %p237, %p238
    %p241 = scmp.ne.s32.totalorder %s226, %s240
    %p242 = scmp.eq.s32.totalorder %s27, 0
    %p243 = por %p241, %p242
    %s245 = sadd.s32 %s244, 1
    %p248 = scmp.eq.s32.totalorder %s21, 7
    %p249 = scmp.ne.s32.totalorder %s244, %s246
    %p250 = scmp.eq.s32.totalorder %s21, 0
    %p251 = por %p249, %p250
    %p252 = scmp.ne.s32.totalorder %s244, %s246
    %p253 = scmp.eq.s32.totalorder %s26, 7
    %p254 = por %p252, %p253
    %p255 = scmp.ne.s32.totalorder %s246, %s247
    %p256 = scmp.eq.s32.totalorder %s26, 0
    %p257 = por %p255, %p256
    %p258 = scmp.ne.s32.totalorder %s246, %s247
    %p259 = scmp.eq.s32.totalorder %s27, 7
    %p260 = por %p258, %p259
    %p262 = scmp.ne.s32.totalorder %s247, %s261
    %p263 = scmp.eq.s32.totalorder %s27, 0
    %p264 = por %p262, %p263
    %s266 = sadd.s32 %s265, 1
    %p269 = scmp.eq.s32.totalorder %s21, 7
    %p270 = scmp.ne.s32.totalorder %s265, %s267
    %p271 = scmp.eq.s32.totalorder %s21, 0
    %p272 = por %p270, %p271
    %p273 = scmp.ne.s32.totalorder %s265, %s267
    %p274 = scmp.eq.s32.totalorder %s26, 7
    %p275 = por %p273, %p274
    %p276 = scmp.ne.s32.totalorder %s267, %s268
    %p277 = scmp.eq.s32.totalorder %s26, 0
    %p278 = por %p276, %p277
    %p279 = scmp.ne.s32.totalorder %s267, %s268
    %p280 = scmp.eq.s32.totalorder %s27, 7
    %p281 = por %p279, %p280
    %p283 = scmp.ne.s32.totalorder %s268, %s282
    %p284 = scmp.eq.s32.totalorder %s27, 0
    %p285 = por %p283, %p284
    %s287 = sadd.s32 %s286, 1
    %p290 = scmp.eq.s32.totalorder %s21, 7
    %p291 = scmp.ne.s32.totalorder %s286, %s288
    %p292 = scmp.eq.s32.totalorder %s21, 0
    %p293 = por %p291, %p292
    %p294 = scmp.ne.s32.totalorder %s286, %s288
    %p295 = scmp.eq.s32.totalorder %s26, 7
    %p296 = por %p294, %p295
    %p297 = scmp.ne.s32.totalorder %s288, %s289
    %p298 = scmp.eq.s32.totalorder %s26, 0
    %p299 = por %p297, %p298
    %p300 = scmp.ne.s32.totalorder %s288, %s289
    %p301 = scmp.eq.s32.totalorder %s27, 7
    %p302 = por %p300, %p301
    %p304 = scmp.ne.s32.totalorder %s289, %s303
    %p305 = scmp.eq.s32.totalorder %s27, 0
    %p306 = por %p304, %p305
    %s308 = sadd.s32 %s307, 1
    %p311 = scmp.eq.s32.totalorder %s21, 7
    %p312 = scmp.ne.s32.totalorder %s307, %s309
    %p313 = scmp.eq.s32.totalorder %s21, 0
    %p314 = por %p312, %p313
    %p315 = scmp.ne.s32.totalorder %s307, %s309
    %p316 = scmp.eq.s32.totalorder %s26, 7
    %p317 = por %p315, %p316
    %p318 = scmp.ne.s32.totalorder %s309, %s310
    %p319 = scmp.eq.s32.totalorder %s26, 0
    %p320 = por %p318, %p319
    %p321 = scmp.ne.s32.totalorder %s309, %s310
    %p322 = scmp.eq.s32.totalorder %s27, 7
    %p323 = por %p321, %p322
    %p325 = scmp.ne.s32.totalorder %s310, %s324
    %p326 = scmp.eq.s32.totalorder %s27, 0
    %p327 = por %p325, %p326
    %s329 = sadd.s32 %s328, 1
    %p332 = scmp.eq.s32.totalorder %s21, 7
    %p333 = scmp.ne.s32.totalorder %s328, %s330
    %p334 = scmp.eq.s32.totalorder %s21, 0
    %p335 = por %p333, %p334
    %p336 = scmp.ne.s32.totalorder %s328, %s330
    %p337 = scmp.eq.s32.totalorder %s26, 7
    %p338 = por %p336, %p337
    %p339 = scmp.ne.s32.totalorder %s330, %s331
    %p340 = scmp.eq.s32.totalorder %s26, 0
    %p341 = por %p339, %p340
    %p342 = scmp.ne.s32.totalorder %s330, %s331
    %p343 = scmp.eq.s32.totalorder %s27, 7
    %p344 = por %p342, %p343
    %p346 = scmp.ne.s32.totalorder %s331, %s345
    %p347 = scmp.eq.s32.totalorder %s27, 0
    %p348 = por %p346, %p347
    %s349 = ssub.s32 %s21, %s28
    %p350 = scmp.eq.s32.totalorder %s349, 0
    %s352 = sadd.s32 %s351, 1
    %s353 = scalar_select %p350, %s351, %s352
    %p356 = pneg %p350
    %p357 = scmp.eq.s32.totalorder %s21, 7
    %p358 = por %p356, %p357
    %p359 = scmp.ne.s32.totalorder %s351, %s354
    %p360 = scmp.eq.s32.totalorder %s21, 0
    %p361 = por %p359, %p360
    %p362 = scmp.ne.s32.totalorder %s351, %s354
    %p363 = scmp.eq.s32.totalorder %s26, 7
    %p364 = por %p362, %p363
    %p365 = scmp.ne.s32.totalorder %s354, %s355
    %p366 = scmp.eq.s32.totalorder %s26, 0
    %p367 = por %p365, %p366
    %p368 = scmp.ne.s32.totalorder %s354, %s355
    %p369 = scmp.eq.s32.totalorder %s27, 7
    %p370 = por %p368, %p369
    %p372 = scmp.ne.s32.totalorder %s355, %s371
    %p373 = scmp.eq.s32.totalorder %s27, 0
    %p374 = por %p372, %p373
    %p375 = scmp.le.s32.totalorder 1, %s21
    %p376 = scmp.lt.s32.totalorder %s21, 9
    %p377 = pnand %p375, %p376
    %p378 = pneg %p377
    // Predicated region
    $region9: #{tpu_custom_call.1} parent=5 // pred_check
      _
    $region10: #{tpu_custom_call.1} parent=5 // pred_check_branch
      %380 = sbr.rel (%p377) target = $region12
    $region11: #{tpu_custom_call.1} parent=5 // pred_region
      %s381 = ssub.s32 %s21, 1
      // Predicated region
      $region13: #{tpu_custom_call.1} parent=11 // pred_check
        %p382 = pneg %p68
      $region14: #{tpu_custom_call.1} parent=11 // pred_check_branch
        %384 = sbr.rel (%p382) target = $region16
      $region15: #{tpu_custom_call.1} parent=11 // pred_region
        _
      $region16: #{tpu_custom_call.1} parent=11 // pred_fallthru
        _
      // Predicated region
      $region17: #{tpu_custom_call.1} parent=11 // pred_check
        %p385 = pneg %p89
      $region18: #{tpu_custom_call.1} parent=11 // pred_check_branch
        %387 = sbr.rel (%p385) target = $region20
      $region19: #{tpu_custom_call.1} parent=11 // pred_region
        _
      $region20: #{tpu_custom_call.1} parent=11 // pred_fallthru
        _
      // Predicated region
      $region21: #{tpu_custom_call.1} parent=11 // pred_check
        %p388 = pneg %p110
      $region22: #{tpu_custom_call.1} parent=11 // pred_check_branch
        %390 = sbr.rel (%p388) target = $region24
      $region23: #{tpu_custom_call.1} parent=11 // pred_region
        _
      $region24: #{tpu_custom_call.1} parent=11 // pred_fallthru
        _
      // Predicated region
      $region25: #{tpu_custom_call.1} parent=11 // pred_check
        %p391 = pneg %p131
      $region26: #{tpu_custom_call.1} parent=11 // pred_check_branch
        %393 = sbr.rel (%p391) target = $region28
      $region27: #{tpu_custom_call.1} parent=11 // pred_region
        _
      $region28: #{tpu_custom_call.1} parent=11 // pred_fallthru
        _
      // Predicated region
      $region29: #{tpu_custom_call.1} parent=11 // pred_check
        %p394 = pneg %p152
      $region30: #{tpu_custom_call.1} parent=11 // pred_check_branch
        %396 = sbr.rel (%p394) target = $region32
      $region31: #{tpu_custom_call.1} parent=11 // pred_region
        _
      $region32: #{tpu_custom_call.1} parent=11 // pred_fallthru
        _
      // Predicated region
      $region33: #{tpu_custom_call.1} parent=11 // pred_check
        %p397 = pneg %p173
      $region34: #{tpu_custom_call.1} parent=11 // pred_check_branch
        %399 = sbr.rel (%p397) target = $region36
      $region35: #{tpu_custom_call.1} parent=11 // pred_region
        _
      $region36: #{tpu_custom_call.1} parent=11 // pred_fallthru
        _
      // Predicated region
      $region37: #{tpu_custom_call.1} parent=11 // pred_check
        %p400 = pneg %p194
      $region38: #{tpu_custom_call.1} parent=11 // pred_check_branch
        %402 = sbr.rel (%p400) target = $region40
      $region39: #{tpu_custom_call.1} parent=11 // pred_region
        _
      $region40: #{tpu_custom_call.1} parent=11 // pred_fallthru
        _
      // Predicated region
      $region41: #{tpu_custom_call.1} parent=11 // pred_check
        %p403 = pneg %p215
      $region42: #{tpu_custom_call.1} parent=11 // pred_check_branch
        %405 = sbr.rel (%p403) target = $region44
      $region43: #{tpu_custom_call.1} parent=11 // pred_region
        _
      $region44: #{tpu_custom_call.1} parent=11 // pred_fallthru
        _
      // Predicated region
      $region45: #{tpu_custom_call.1} parent=11 // pred_check
        %p406 = pneg %p236
      $region46: #{tpu_custom_call.1} parent=11 // pred_check_branch
        %408 = sbr.rel (%p406) target = $region48
      $region47: #{tpu_custom_call.1} parent=11 // pred_region
        _
      $region48: #{tpu_custom_call.1} parent=11 // pred_fallthru
        _
      // Predicated region
      $region49: #{tpu_custom_call.1} parent=11 // pred_check
        %p409 = pneg %p257
      $region50: #{tpu_custom_call.1} parent=11 // pred_check_branch
        %411 = sbr.rel (%p409) target = $region52
      $region51: #{tpu_custom_call.1} parent=11 // pred_region
        _
      $region52: #{tpu_custom_call.1} parent=11 // pred_fallthru
        _
      // Predicated region
      $region53: #{tpu_custom_call.1} parent=11 // pred_check
        %p412 = pneg %p278
      $region54: #{tpu_custom_call.1} parent=11 // pred_check_branch
        %414 = sbr.rel (%p412) target = $region56
      $region55: #{tpu_custom_call.1} parent=11 // pred_region
        _
      $region56: #{tpu_custom_call.1} parent=11 // pred_fallthru
        _
      // Predicated region
      $region57: #{tpu_custom_call.1} parent=11 // pred_check
        %p415 = pneg %p299
      $region58: #{tpu_custom_call.1} parent=11 // pred_check_branch
        %417 = sbr.rel (%p415) target = $region60
      $region59: #{tpu_custom_call.1} parent=11 // pred_region
        _
      $region60: #{tpu_custom_call.1} parent=11 // pred_fallthru
        _
      // Predicated region
      $region61: #{tpu_custom_call.1} parent=11 // pred_check
        %p418 = pneg %p320
      $region62: #{tpu_custom_call.1} parent=11 // pred_check_branch
        %420 = sbr.rel (%p418) target = $region64
      $region63: #{tpu_custom_call.1} parent=11 // pred_region
        _
      $region64: #{tpu_custom_call.1} parent=11 // pred_fallthru
        _
      // Predicated region
      $region65: #{tpu_custom_call.1} parent=11 // pred_check
        %p421 = pneg %p341
      $region66: #{tpu_custom_call.1} parent=11 // pred_check_branch
        %423 = sbr.rel (%p421) target = $region68
      $region67: #{tpu_custom_call.1} parent=11 // pred_region
        _
      $region68: #{tpu_custom_call.1} parent=11 // pred_fallthru
        _
    $region12: #{tpu_custom_call.1} parent=5 // pred_fallthru
      _
    %p424 = scmp.lt.s32.totalorder %s21, 8
    // Predicated region
    $region69: #{tpu_custom_call.1} parent=5 // pred_check
      %p425 = pneg %p424
    $region70: #{tpu_custom_call.1} parent=5 // pred_check_branch
      %427 = sbr.rel (%p425) target = $region72
    $region71: #{tpu_custom_call.1} parent=5 // pred_region
      // Predicated region
      $region73: #{tpu_custom_call.1} parent=71 // pred_check
        %p428 = pneg %p41
      $region74: #{tpu_custom_call.1} parent=71 // pred_check_branch
        %430 = sbr.rel (%p428) target = $region76
      $region75: #{tpu_custom_call.1} parent=71 // pred_region
        %s431 = smul.u32 8, %s21
        %p432 = scmp.lt.s32.totalorder %s431, 63
        %s433 = scalar_select %p432, %s431, 63
        %s434 = smul.addr %s433, 4
        %s435 = scalar_lea.vmem %s0, %s434
        %s436 = smul.u32 8, %s21
      $region76: #{tpu_custom_call.1} parent=71 // pred_fallthru
        _
    $region72: #{tpu_custom_call.1} parent=5 // pred_fallthru
      _
    %p437 = scmp.le.s32.totalorder 1, %s21
    %p438 = scmp.lt.s32.totalorder %s21, 9
    %p439 = pnand %p437, %p438
    %p440 = pneg %p439
    // Predicated region
    $region77: #{tpu_custom_call.1} parent=5 // pred_check
      _
    $region78: #{tpu_custom_call.1} parent=5 // pred_check_branch
      %442 = sbr.rel (%p439) target = $region80
    $region79: #{tpu_custom_call.1} parent=5 // pred_region
      %s443 = ssub.s32 %s21, 1
      %s444 = smul.u32 8, %s26
      %p445 = scmp.lt.s32.totalorder %s444, 63
      %s446 = scalar_select %p445, %s444, 63
      %s447 = smul.addr %s446, 4
      %s448 = scalar_lea.vmem %s0, %s447
      %p449 = pneg %p47
      %p450 = pneg %p44
      %p451 = pneg %p68
      %p452 = pneg %p65
      %p453 = pneg %p89
      %p454 = pneg %p86
      %p455 = pneg %p110
      %p456 = pneg %p107
      %p457 = pneg %p131
      %p458 = pneg %p128
      %p459 = pneg %p152
      %p460 = pneg %p149
      %p461 = pneg %p173
      %p462 = pneg %p170
      %p463 = pneg %p194
      %p464 = pneg %p191
      %p465 = pneg %p215
      %p466 = pneg %p212
      %p467 = pneg %p236
      %p468 = pneg %p233
      %p469 = pneg %p257
      %p470 = pneg %p254
      %p471 = pneg %p278
      %p472 = pneg %p275
      %p473 = pneg %p299
      %p474 = pneg %p296
      %p475 = pneg %p320
      %p476 = pneg %p317
      %p477 = pneg %p341
      %p478 = pneg %p338
      %p479 = pneg %p367
      %p480 = pneg %p364
      %s481 = smul.u32 8, %s26
      %p482 = scmp.lt.s32.totalorder %s481, 63
      %s483 = scalar_select %p482, %s481, 63
      %s484 = smul.addr %s483, 4
      %s485 = scalar_lea.vmem %s15, %s484
      %s486 = smul.u32 8, %s26
      %p487 = scmp.lt.s32.totalorder %s486, 63
      %s488 = scalar_select %p487, %s486, 63
      %s489 = smul.addr %s488, 4
      %s490 = scalar_lea.vmem %s0, %s489
      %s491 = smul.u32 8, %s26
      %s492 = smul.u32 8, %s26
      %p493 = scmp.lt.s32.totalorder %s492, 63
      %s494 = scalar_select %p493, %s492, 63
      %s495 = smul.addr %s494, 4
      %s496 = scalar_lea.vmem %s15, %s495
      %s497 = smul.u32 8, %s26
      %v499 = vld [vmem:[%s1] sm:$0xff]
      %v500 = vld [vmem:[%s1 + $0x8] sm:$0xff]
      %v501 = vld [vmem:[%s1 + $0x10] sm:$0xff]
      %v502 = vld [vmem:[%s1 + $0x18] sm:$0xff]
      %v503 = vld [vmem:[%s1 + $0x20] sm:$0xff]
      %v504 = vld [vmem:[%s1 + $0x28] sm:$0xff]
      %v505 = vld [vmem:[%s1 + $0x30] sm:$0xff]
      %v506 = vld [vmem:[%s1 + $0x38] sm:$0xff]
      %v507 = vld [vmem:[%s2] sm:$0xff]
      %v508 = vld [vmem:[%s2 + $0x8] sm:$0xff]
      %v509 = vld [vmem:[%s2 + $0x10] sm:$0xff]
      %v510 = vld [vmem:[%s2 + $0x18] sm:$0xff]
      %v511 = vld [vmem:[%s2 + $0x20] sm:$0xff]
      %v512 = vld [vmem:[%s2 + $0x28] sm:$0xff]
      %v513 = vld [vmem:[%s2 + $0x30] sm:$0xff]
      %v514 = vld [vmem:[%s2 + $0x38] sm:$0xff]
      %v515 = vld [vmem:[%s3] sm:$0x1]
      %v516 = vld [vmem:[%s4] sm:$0xf]
      %v517 = vld [vmem:[%s4 + $0x4] sm:$0xf]
      %v518 = vld [vmem:[%s4 + $0x8] sm:$0xf]
      %v519 = vld [vmem:[%s4 + $0xc] sm:$0xf]
      %v520 = vld [vmem:[%s4 + $0x10] sm:$0xf]
      %v521 = vld [vmem:[%s4 + $0x14] sm:$0xf]
      %v522 = vld [vmem:[%s4 + $0x18] sm:$0xf]
      %v523 = vld [vmem:[%s4 + $0x1c] sm:$0xf]
      %v524 = vld [vmem:[%s490] sm:$0xf]
      %v525 = vld [vmem:[%s490 + $0x4] sm:$0xf]
      %v526 = vld [vmem:[%s490 + $0x8] sm:$0xf]
      %v527 = vld [vmem:[%s490 + $0xc] sm:$0xf]
      %v528 = vld [vmem:[%s490 + $0x10] sm:$0xf]
      %v529 = vld [vmem:[%s490 + $0x14] sm:$0xf]
      %v530 = vld [vmem:[%s490 + $0x18] sm:$0xf]
      %v531 = vld [vmem:[%s490 + $0x1c] sm:$0xf]
      %v532 = vld [vmem:[%s5] sm:$0xf]
      %v533 = vld [vmem:[%s5 + $0x4] sm:$0xf]
      %v534 = vld [vmem:[%s5 + $0x8] sm:$0xf]
      %v535 = vld [vmem:[%s5 + $0xc] sm:$0xf]
      %v536 = vld [vmem:[%s5 + $0x10] sm:$0xf]
      %v537 = vld [vmem:[%s5 + $0x14] sm:$0xf]
      %v538 = vld [vmem:[%s5 + $0x18] sm:$0xf]
      %v539 = vld [vmem:[%s5 + $0x1c] sm:$0xf]
      %v540 = vld [vmem:[%s6] sm:$0x1]
      %v542 = vlaneseq
      %v543 = vshrl.u32 %v542, 7
      %v544 = vsub.s32 0, %v543
      %v545 = vrot.slane %v540, %v544
      %v555 = vunpack.c.l.b16 %v524
      %v556 = vunpack.c.l.b16 %v525
      %v557 = vunpack.c.l.b16 %v526
      %v558 = vunpack.c.l.b16 %v527
      %v559 = vunpack.c.l.b16 %v528
      %v560 = vunpack.c.l.b16 %v529
      %v561 = vunpack.c.l.b16 %v530
      %v562 = vunpack.c.l.b16 %v531
      %v563 = vpack.c.b16 %v556, %v555
      %v564 = vpack.c.b16 %v558, %v557
      %v565 = vpack.c.b16 %v560, %v559
      %v566 = vpack.c.b16 %v562, %v561
      %v575 = vunpack.c.l.b16 %v532
      %v576 = vunpack.c.l.b16 %v533
      %v577 = vunpack.c.l.b16 %v534
      %v578 = vunpack.c.l.b16 %v535
      %v579 = vunpack.c.l.b16 %v536
      %v580 = vunpack.c.l.b16 %v537
      %v581 = vunpack.c.l.b16 %v538
      %v582 = vunpack.c.l.b16 %v539
      %v583 = vpack.c.b16 %v576, %v575
      %v584 = vpack.c.b16 %v578, %v577
      %v585 = vpack.c.b16 %v580, %v579
      %v586 = vpack.c.b16 %v582, %v581
      %vm591 = vcmask 523264
      %v593 = vsel %vm591, %v563, 0
      %v596 = vsel %vm591, %v564, 0
      %v599 = vsel %vm591, %v565, 0
      %v602 = vsel %vm591, %v566, 0
      %604 = vmatprep.subr.bf16.mxu0 0
      %605 = vmatpush1.bf16.msra.mxu0 %v583
      %606 = vmatprep.subr.bf16.mxu0 0
      %607 = vmatpush1.bf16.msra.mxu0 %v584
      %608 = vmatprep.subr.bf16.mxu0 0
      %609 = vmatpush1.bf16.msra.mxu0 %v585
      %610 = vmatprep.subr.bf16.mxu0 0
      %611 = vmatpush1.bf16.msra.mxu0 %v586
      %612 = vmatprep.subr.bf16.mxu0 0
      %613 = vmatpush1.bf16.msra.mxu0 0
      %614 = vmatprep.subr.bf16.mxu0 0
      %615 = vmatpush1.bf16.msra.mxu0 0
      %616 = vmatprep.subr.bf16.mxu0 0
      %617 = vmatpush1.bf16.msra.mxu0 0
      %618 = vmatprep.subr.bf16.mxu0 0
      %619 = vmatpush1.bf16.msra.mxu0 0
      %620 = vmatprep.subr.bf16.mxu0 0
      %621 = vmatpush1.bf16.msra.mxu0 0
      %622 = vmatprep.subr.bf16.mxu0 0
      %623 = vmatpush1.bf16.msra.mxu0 0
      %624 = vmatprep.subr.bf16.mxu0 0
      %625 = vmatpush1.bf16.msra.mxu0 0
      %626 = vmatprep.subr.bf16.mxu0 0
      %627 = vmatpush1.bf16.msra.mxu0 0
      %628 = vmatprep.subr.bf16.mxu0 0
      %629 = vmatpush1.bf16.msra.mxu0 0
      %630 = vmatprep.subr.bf16.mxu0 0
      %631 = vmatpush1.bf16.msra.mxu0 0
      %632 = vmatprep.subr.bf16.mxu0 0
      %633 = vmatpush1.bf16.msra.mxu0 0
      %634 = vmatprep.subr.bf16.mxu0 0
      %635 = vmatpush1.bf16.msra.mxu0 0
      %636 = vmatprep.mubr.bf16.mxu0 0
      %637 = vmatmul.mubr.bf16.gmra.mrb[0].mxu0 %v593
      %v638 = vpop.f32.mrb[0].mxu0
      %v639 = vadd.f32 %v545, %v638
      %v640 = vpop.f32.mrb[0].mxu0
      %v641 = vpop.f32.mrb[0].mxu0
      %v642 = vadd.f32 %v545, %v641
      %v643 = vpop.f32.mrb[0].mxu0
      %644 = vmatprep.mubr.bf16.mxu0 0
      %645 = vmatmul.mubr.bf16.gmra.mrb[0].mxu0 %v596
      %v646 = vpop.f32.mrb[0].mxu0
      %v647 = vadd.f32 %v545, %v646
      %v648 = vpop.f32.mrb[0].mxu0
      %v649 = vpop.f32.mrb[0].mxu0
      %v650 = vadd.f32 %v545, %v649
      %v651 = vpop.f32.mrb[0].mxu0
      %652 = vmatprep.mubr.bf16.mxu0 0
      %653 = vmatmul.mubr.bf16.gmra.mrb[0].mxu0 %v599
      %v654 = vpop.f32.mrb[0].mxu0
      %v655 = vadd.f32 %v545, %v654
      %v656 = vpop.f32.mrb[0].mxu0
      %v657 = vpop.f32.mrb[0].mxu0
      %v658 = vadd.f32 %v545, %v657
      %v659 = vpop.f32.mrb[0].mxu0
      %660 = vmatprep.mubr.bf16.mxu0 0
      %661 = vmatmul.mubr.bf16.gmra.mrb[0].mxu0 %v602
      %v662 = vpop.f32.mrb[0].mxu0
      %v663 = vadd.f32 %v545, %v662
      %v664 = vpop.f32.mrb[0].mxu0
      %v665 = vpop.f32.mrb[0].mxu0
      %v666 = vadd.f32 %v545, %v665
      %v667 = vpop.f32.mrb[0].mxu0
      %668 = vdwg.mxu0
      %v669 = vmax.f32 %v639, 0.0
      %v670 = vmax.f32 %v642, 0.0
      %v671 = vmax.f32 %v647, 0.0
      %v672 = vmax.f32 %v650, 0.0
      %v673 = vmax.f32 %v655, 0.0
      %v674 = vmax.f32 %v658, 0.0
      %v675 = vmax.f32 %v663, 0.0
      %v676 = vmax.f32 %v666, 0.0
      %v677 = vld [vmem:[%s7] sm:$0x1]
      %v678 = vld [vmem:[%s7 + $0x1] sm:$0x1]
      %v679 = vld [vmem:[%s7 + $0x2] sm:$0x1]
      %v680 = vrot.slane %v669, 7
      %v681 = vrot.slane %v670, 7
      %v682 = vrot.slane %v671, 7
      %v683 = vrot.slane %v672, 7
      %v684 = vrot.slane %v673, 7
      %v685 = vrot.slane %v674, 7
      %v686 = vrot.slane %v675, 7
      %v687 = vrot.slane %v676, 7
      %v688 = vlaneseq
      %v689 = vshrl.u32 %v688, 7
      %vm690 = vcmp.lt.s32.totalorder %v689, 1
      %v691 = vsel %vm690, %v686, %v687
      %v692 = vsel %vm690, %v685, %v686
      %v693 = vsel %vm690, %v684, %v685
      %v694 = vsel %vm690, %v683, %v684
      %v695 = vsel %vm690, %v682, %v683
      %v696 = vsel %vm690, %v681, %v682
      %v697 = vsel %vm690, %v680, %v681
      %v698 = vsel %vm690, %v687, %v680
      %700 = vset.pattern.permute.xlu0 0
      %701 = vperm.xlu0 %700, %v499
      %v702 = vpop.permute.xlu0 %701
      %705 = vset.pattern.permute.xlu0 0
      %706 = vperm.xlu0 %705, %v500
      %v707 = vpop.permute.xlu0 %706
      %710 = vset.pattern.permute.xlu0 0
      %711 = vperm.xlu0 %710, %v501
      %v712 = vpop.permute.xlu0 %711
      %715 = vset.pattern.permute.xlu0 0
      %716 = vperm.xlu0 %715, %v502
      %v717 = vpop.permute.xlu0 %716
      %720 = vset.pattern.permute.xlu0 0
      %721 = vperm.xlu0 %720, %v503
      %v722 = vpop.permute.xlu0 %721
      %725 = vset.pattern.permute.xlu0 0
      %726 = vperm.xlu0 %725, %v504
      %v727 = vpop.permute.xlu0 %726
      %730 = vset.pattern.permute.xlu0 0
      %731 = vperm.xlu0 %730, %v505
      %v732 = vpop.permute.xlu0 %731
      %735 = vset.pattern.permute.xlu0 0
      %736 = vperm.xlu0 %735, %v506
      %v737 = vpop.permute.xlu0 %736
      %v739 = vmul.f32 %v698, %v702
      %v740 = vmul.f32 %v697, %v707
      %v741 = vmul.f32 %v696, %v712
      %v742 = vmul.f32 %v695, %v717
      %v743 = vmul.f32 %v694, %v722
      %v744 = vmul.f32 %v693, %v727
      %v745 = vmul.f32 %v692, %v732
      %v746 = vmul.f32 %v691, %v737
      %v747 = vrot.slane %v669, 1
      %v748 = vrot.slane %v670, 1
      %v749 = vrot.slane %v671, 1
      %v750 = vrot.slane %v672, 1
      %v751 = vrot.slane %v673, 1
      %v752 = vrot.slane %v674, 1
      %v753 = vrot.slane %v675, 1
      %v754 = vrot.slane %v676, 1
      %vm755 = vcmp.lt.s32.totalorder %v689, 7
      %v756 = vsel %vm755, %v753, %v754
      %v757 = vsel %vm755, %v752, %v753
      %v758 = vsel %vm755, %v751, %v752
      %v759 = vsel %vm755, %v750, %v751
      %v760 = vsel %vm755, %v749, %v750
      %v761 = vsel %vm755, %v748, %v749
      %v762 = vsel %vm755, %v747, %v748
      %v763 = vsel %vm755, %v754, %v747
      %765 = vset.pattern.permute.xlu0 0
      %766 = vperm.xlu0 %765, %v507
      %v767 = vpop.permute.xlu0 %766
      %770 = vset.pattern.permute.xlu0 0
      %771 = vperm.xlu0 %770, %v508
      %v772 = vpop.permute.xlu0 %771
      %775 = vset.pattern.permute.xlu0 0
      %776 = vperm.xlu0 %775, %v509
      %v777 = vpop.permute.xlu0 %776
      %780 = vset.pattern.permute.xlu0 0
      %781 = vperm.xlu0 %780, %v510
      %v782 = vpop.permute.xlu0 %781
      %785 = vset.pattern.permute.xlu0 0
      %786 = vperm.xlu0 %785, %v511
      %v787 = vpop.permute.xlu0 %786
      %790 = vset.pattern.permute.xlu0 0
      %791 = vperm.xlu0 %790, %v512
      %v792 = vpop.permute.xlu0 %791
      %795 = vset.pattern.permute.xlu0 0
      %796 = vperm.xlu0 %795, %v513
      %v797 = vpop.permute.xlu0 %796
      %800 = vset.pattern.permute.xlu0 0
      %801 = vperm.xlu0 %800, %v514
      %v802 = vpop.permute.xlu0 %801
      %v804 = vmul.f32 %v762, %v767
      %v805 = vmul.f32 %v761, %v772
      %v806 = vmul.f32 %v760, %v777
      %v807 = vmul.f32 %v759, %v782
      %v808 = vmul.f32 %v758, %v787
      %v809 = vmul.f32 %v757, %v792
      %v810 = vmul.f32 %v756, %v797
      %v811 = vmul.f32 %v763, %v802
      %v813 = vlaneseq
      %v814 = vshrl.u32 %v813, 7
      %v815 = vsub.s32 0, %v814
      %v816 = vrot.slane %v677, %v815
      %v818 = vmul.f32 %v739, %v816
      %v819 = vmul.f32 %v740, %v816
      %v820 = vmul.f32 %v741, %v816
      %v821 = vmul.f32 %v742, %v816
      %v822 = vmul.f32 %v743, %v816
      %v823 = vmul.f32 %v744, %v816
      %v824 = vmul.f32 %v745, %v816
      %v825 = vmul.f32 %v746, %v816
      %v827 = vlaneseq
      %v828 = vshrl.u32 %v827, 7
      %v829 = vsub.s32 0, %v828
      %v830 = vrot.slane %v678, %v829
      %v832 = vmul.f32 %v669, %v830
      %v833 = vmul.f32 %v670, %v830
      %v834 = vmul.f32 %v671, %v830
      %v835 = vmul.f32 %v672, %v830
      %v836 = vmul.f32 %v673, %v830
      %v837 = vmul.f32 %v674, %v830
      %v838 = vmul.f32 %v675, %v830
      %v839 = vmul.f32 %v676, %v830
      %v840 = vadd.f32 %v818, %v832
      %v841 = vadd.f32 %v819, %v833
      %v842 = vadd.f32 %v820, %v834
      %v843 = vadd.f32 %v821, %v835
      %v844 = vadd.f32 %v822, %v836
      %v845 = vadd.f32 %v823, %v837
      %v846 = vadd.f32 %v824, %v838
      %v847 = vadd.f32 %v825, %v839
      %v849 = vlaneseq
      %v850 = vshrl.u32 %v849, 7
      %v851 = vsub.s32 0, %v850
      %v852 = vrot.slane %v679, %v851
      %v854 = vmul.f32 %v804, %v852
      %v855 = vmul.f32 %v805, %v852
      %v856 = vmul.f32 %v806, %v852
      %v857 = vmul.f32 %v807, %v852
      %v858 = vmul.f32 %v808, %v852
      %v859 = vmul.f32 %v809, %v852
      %v860 = vmul.f32 %v810, %v852
      %v861 = vmul.f32 %v811, %v852
      %v862 = vadd.f32 %v840, %v854
      %v863 = vadd.f32 %v841, %v855
      %v864 = vadd.f32 %v842, %v856
      %v865 = vadd.f32 %v843, %v857
      %v866 = vadd.f32 %v844, %v858
      %v867 = vadd.f32 %v845, %v859
      %v868 = vadd.f32 %v846, %v860
      %v869 = vadd.f32 %v847, %v861
      %v870 = vld [vmem:[%s8] sm:$0x1]
      %v872 = vlaneseq
      %v873 = vshrl.u32 %v872, 7
      %v874 = vsub.s32 0, %v873
      %v875 = vrot.slane %v870, %v874
      %v877 = vadd.f32 %v862, %v875
      %v878 = vadd.f32 %v863, %v875
      %v879 = vadd.f32 %v864, %v875
      %v880 = vadd.f32 %v865, %v875
      %v881 = vadd.f32 %v866, %v875
      %v882 = vadd.f32 %v867, %v875
      %v883 = vadd.f32 %v868, %v875
      %v884 = vadd.f32 %v869, %v875
      %v885 = vmax.f32 %v877, 0.0
      %v886 = vmax.f32 %v878, 0.0
      %v887 = vmax.f32 %v879, 0.0
      %v888 = vmax.f32 %v880, 0.0
      %v889 = vmax.f32 %v881, 0.0
      %v890 = vmax.f32 %v882, 0.0
      %v891 = vmax.f32 %v883, 0.0
      %v892 = vmax.f32 %v884, 0.0
      %v893 = vpack.c.bf16 %v886, %v885
      %v894 = vpack.c.bf16 %v888, %v887
      %v895 = vpack.c.bf16 %v890, %v889
      %v896 = vpack.c.bf16 %v892, %v891
      %v897 = vld [vmem:[%s9] sm:$0xf]
      %v898 = vld [vmem:[%s9 + $0x4] sm:$0xf]
      %v899 = vld [vmem:[%s9 + $0x8] sm:$0xf]
      %v900 = vld [vmem:[%s9 + $0xc] sm:$0xf]
      %v901 = vld [vmem:[%s10] sm:$0x1]
      %v903 = vlaneseq
      %v904 = vshrl.u32 %v903, 7
      %v905 = vsub.s32 0, %v904
      %v906 = vrot.slane %v901, %v905
      %v912 = vunpack.c.l.b16 %v897
      %v913 = vunpack.c.l.b16 %v898
      %v914 = vunpack.c.l.b16 %v899
      %v915 = vunpack.c.l.b16 %v900
      %v916 = vpack.c.b16 %v913, %v912
      %v917 = vpack.c.b16 %v915, %v914
      %vm920 = vcmask 261120
      %v922 = vsel %vm920, %v893, 0
      %v925 = vsel %vm920, %v894, 0
      %v928 = vsel %vm920, %v895, 0
      %v931 = vsel %vm920, %v896, 0
      %933 = vmatprep.subr.bf16.mxu0 0
      %934 = vmatpush1.bf16.msra.mxu0 %v916
      %935 = vmatprep.subr.bf16.mxu0 0
      %936 = vmatpush1.bf16.msra.mxu0 %v917
      %937 = vmatprep.subr.bf16.mxu0 0
      %938 = vmatpush1.bf16.msra.mxu0 0
      %939 = vmatprep.subr.bf16.mxu0 0
      %940 = vmatpush1.bf16.msra.mxu0 0
      %941 = vmatprep.subr.bf16.mxu0 0
      %942 = vmatpush1.bf16.msra.mxu0 0
      %943 = vmatprep.subr.bf16.mxu0 0
      %944 = vmatpush1.bf16.msra.mxu0 0
      %945 = vmatprep.subr.bf16.mxu0 0
      %946 = vmatpush1.bf16.msra.mxu0 0
      %947 = vmatprep.subr.bf16.mxu0 0
      %948 = vmatpush1.bf16.msra.mxu0 0
      %949 = vmatprep.subr.bf16.mxu0 0
      %950 = vmatpush1.bf16.msra.mxu0 0
      %951 = vmatprep.subr.bf16.mxu0 0
      %952 = vmatpush1.bf16.msra.mxu0 0
      %953 = vmatprep.subr.bf16.mxu0 0
      %954 = vmatpush1.bf16.msra.mxu0 0
      %955 = vmatprep.subr.bf16.mxu0 0
      %956 = vmatpush1.bf16.msra.mxu0 0
      %957 = vmatprep.subr.bf16.mxu0 0
      %958 = vmatpush1.bf16.msra.mxu0 0
      %959 = vmatprep.subr.bf16.mxu0 0
      %960 = vmatpush1.bf16.msra.mxu0 0
      %961 = vmatprep.subr.bf16.mxu0 0
      %962 = vmatpush1.bf16.msra.mxu0 0
      %963 = vmatprep.subr.bf16.mxu0 0
      %964 = vmatpush1.bf16.msra.mxu0 0
      %965 = vmatprep.mubr.bf16.mxu0 0
      %966 = vmatmul.mubr.bf16.gmra.mrb[0].mxu0 %v922
      %v967 = vpop.f32.mrb[0].mxu0
      %v968 = vadd.f32 %v906, %v967
      %v969 = vpop.f32.mrb[0].mxu0
      %v970 = vpop.f32.mrb[0].mxu0
      %v971 = vadd.f32 %v906, %v970
      %v972 = vpop.f32.mrb[0].mxu0
      %973 = vmatprep.mubr.bf16.mxu0 0
      %974 = vmatmul.mubr.bf16.gmra.mrb[0].mxu0 %v925
      %v975 = vpop.f32.mrb[0].mxu0
      %v976 = vadd.f32 %v906, %v975
      %v977 = vpop.f32.mrb[0].mxu0
      %v978 = vpop.f32.mrb[0].mxu0
      %v979 = vadd.f32 %v906, %v978
      %v980 = vpop.f32.mrb[0].mxu0
      %981 = vmatprep.mubr.bf16.mxu0 0
      %982 = vmatmul.mubr.bf16.gmra.mrb[0].mxu0 %v928
      %v983 = vpop.f32.mrb[0].mxu0
      %v984 = vadd.f32 %v906, %v983
      %v985 = vpop.f32.mrb[0].mxu0
      %v986 = vpop.f32.mrb[0].mxu0
      %v987 = vadd.f32 %v906, %v986
      %v988 = vpop.f32.mrb[0].mxu0
      %989 = vmatprep.mubr.bf16.mxu0 0
      %990 = vmatmul.mubr.bf16.gmra.mrb[0].mxu0 %v931
      %v991 = vpop.f32.mrb[0].mxu0
      %v992 = vadd.f32 %v906, %v991
      %v993 = vpop.f32.mrb[0].mxu0
      %v994 = vpop.f32.mrb[0].mxu0
      %v995 = vadd.f32 %v906, %v994
      %v996 = vpop.f32.mrb[0].mxu0
      %997 = vdwg.mxu0
      %v998 = vpack.c.bf16 %v971, %v968
      %v999 = vpack.c.bf16 %v979, %v976
      %v1000 = vpack.c.bf16 %v987, %v984
      %v1001 = vpack.c.bf16 %v995, %v992
      %v1003 = vsel %vm591, %v515, 0
      %1005 = vmatprep.subr.bf16.mxu0 0
      %1006 = vmatpush1.bf16.msra.mxu0 %v998
      %1007 = vmatprep.subr.bf16.mxu0 0
      %1008 = vmatpush1.bf16.msra.mxu0 %v999
      %1009 = vmatprep.subr.bf16.mxu0 0
      %1010 = vmatpush1.bf16.msra.mxu0 %v1000
      %1011 = vmatprep.subr.bf16.mxu0 0
      %1012 = vmatpush1.bf16.msra.mxu0 %v1001
      %1013 = vmatprep.subr.bf16.mxu0 0
      %1014 = vmatpush1.bf16.msra.mxu0 0
      %1015 = vmatprep.subr.bf16.mxu0 0
      %1016 = vmatpush1.bf16.msra.mxu0 0
      %1017 = vmatprep.subr.bf16.mxu0 0
      %1018 = vmatpush1.bf16.msra.mxu0 0
      %1019 = vmatprep.subr.bf16.mxu0 0
      %1020 = vmatpush1.bf16.msra.mxu0 0
      %1021 = vmatprep.subr.bf16.mxu0 0
      %1022 = vmatpush1.bf16.msra.mxu0 0
      %1023 = vmatprep.subr.bf16.mxu0 0
      %1024 = vmatpush1.bf16.msra.mxu0 0
      %1025 = vmatprep.subr.bf16.mxu0 0
      %1026 = vmatpush1.bf16.msra.mxu0 0
      %1027 = vmatprep.subr.bf16.mxu0 0
      %1028 = vmatpush1.bf16.msra.mxu0 0
      %1029 = vmatprep.subr.bf16.mxu0 0
      %1030 = vmatpush1.bf16.msra.mxu0 0
      %1031 = vmatprep.subr.bf16.mxu0 0
      %1032 = vmatpush1.bf16.msra.mxu0 0
      %1033 = vmatprep.subr.bf16.mxu0 0
      %1034 = vmatpush1.bf16.msra.mxu0 0
      %1035 = vmatprep.subr.bf16.mxu0 0
      %1036 = vmatpush1.bf16.msra.mxu0 0
      %1037 = vmatprep.mubr.bf16.mxu0 0
      %1038 = vmatmul.mubr.bf16.gmra.mrb[0].mxu0 %v1003
      %v1039 = vpop.f32.mrb[0].mxu0
      %v1040 = vadd.f32 0.0, %v1039
      %v1041 = vpop.f32.mrb[0].mxu0
      %v1042 = vpop.f32.mrb[0].mxu0
      %v1043 = vpop.f32.mrb[0].mxu0
      %1044 = vdwg.mxu0
      %v1045 = vpack.c.bf16 %v1040, %v1040
      %v1046 = vld [vmem:[%s11] sm:$0xf]
      %v1047 = vld [vmem:[%s11 + $0x4] sm:$0xf]
      %v1048 = vld [vmem:[%s11 + $0x8] sm:$0xf]
      %v1049 = vld [vmem:[%s11 + $0xc] sm:$0xf]
      %v1050 = vld [vmem:[%s11 + $0x10] sm:$0xf]
      %v1051 = vld [vmem:[%s11 + $0x14] sm:$0xf]
      %v1052 = vld [vmem:[%s11 + $0x18] sm:$0xf]
      %v1053 = vld [vmem:[%s11 + $0x1c] sm:$0xf]
      %v1054 = vld [vmem:[%s12] sm:$0x1]
      %v1056 = vlaneseq
      %v1057 = vshrl.u32 %v1056, 7
      %v1058 = vsub.s32 0, %v1057
      %v1059 = vrot.slane %v1054, %v1058
      %v1069 = vunpack.c.l.b16 %v1046
      %v1070 = vunpack.c.l.b16 %v1047
      %v1071 = vunpack.c.l.b16 %v1048
      %v1072 = vunpack.c.l.b16 %v1049
      %v1073 = vunpack.c.l.b16 %v1050
      %v1074 = vunpack.c.l.b16 %v1051
      %v1075 = vunpack.c.l.b16 %v1052
      %v1076 = vunpack.c.l.b16 %v1053
      %v1077 = vpack.c.b16 %v1070, %v1069
      %v1078 = vpack.c.b16 %v1072, %v1071
      %v1079 = vpack.c.b16 %v1074, %v1073
      %v1080 = vpack.c.b16 %v1076, %v1075
      %v1086 = vsel %vm591, %v1045, 0
      %1088 = vmatprep.subr.bf16.mxu0 0
      %1089 = vmatpush1.bf16.msra.mxu0 %v1077
      %1090 = vmatprep.subr.bf16.mxu0 0
      %1091 = vmatpush1.bf16.msra.mxu0 %v1078
      %1092 = vmatprep.subr.bf16.mxu0 0
      %1093 = vmatpush1.bf16.msra.mxu0 %v1079
      %1094 = vmatprep.subr.bf16.mxu0 0
      %1095 = vmatpush1.bf16.msra.mxu0 %v1080
      %1096 = vmatprep.subr.bf16.mxu0 0
      %1097 = vmatpush1.bf16.msra.mxu0 0
      %1098 = vmatprep.subr.bf16.mxu0 0
      %1099 = vmatpush1.bf16.msra.mxu0 0
      %1100 = vmatprep.subr.bf16.mxu0 0
      %1101 = vmatpush1.bf16.msra.mxu0 0
      %1102 = vmatprep.subr.bf16.mxu0 0
      %1103 = vmatpush1.bf16.msra.mxu0 0
      %1104 = vmatprep.subr.bf16.mxu0 0
      %1105 = vmatpush1.bf16.msra.mxu0 0
      %1106 = vmatprep.subr.bf16.mxu0 0
      %1107 = vmatpush1.bf16.msra.mxu0 0
      %1108 = vmatprep.subr.bf16.mxu0 0
      %1109 = vmatpush1.bf16.msra.mxu0 0
      %1110 = vmatprep.subr.bf16.mxu0 0
      %1111 = vmatpush1.bf16.msra.mxu0 0
      %1112 = vmatprep.subr.bf16.mxu0 0
      %1113 = vmatpush1.bf16.msra.mxu0 0
      %1114 = vmatprep.subr.bf16.mxu0 0
      %1115 = vmatpush1.bf16.msra.mxu0 0
      %1116 = vmatprep.subr.bf16.mxu0 0
      %1117 = vmatpush1.bf16.msra.mxu0 0
      %1118 = vmatprep.subr.bf16.mxu0 0
      %1119 = vmatpush1.bf16.msra.mxu0 0
      %1120 = vmatprep.mubr.bf16.mxu0 0
      %1121 = vmatmul.mubr.bf16.gmra.mrb[0].mxu0 %v1086
      %v1122 = vpop.f32.mrb[0].mxu0
      %v1123 = vadd.f32 %v1059, %v1122
      %v1124 = vpop.f32.mrb[0].mxu0
      %v1125 = vpop.f32.mrb[0].mxu0
      %v1126 = vpop.f32.mrb[0].mxu0
      %1127 = vdwg.mxu0
      %v1128 = vmax.f32 %v1123, 0.0
      %v1129 = vpack.c.bf16 %v1128, %v1128
      %v1130 = vld [vmem:[%s13] sm:$0x3]
      %v1131 = vld [vmem:[%s14] sm:$0x1]
      %v1133 = vlaneseq
      %v1134 = vshrl.u32 %v1133, 7
      %v1135 = vsub.s32 0, %v1134
      %v1136 = vrot.slane %v1131, %v1135
      %vm1138 = vcmask 31744
      %v1140 = vsel %vm1138, %v1129, 0
      %vm1142 = vcmask 1041408
      %v1144 = vsel %vm1142, %v1130, 0
      %1146 = vmatprep.subr.bf16.mxu0 0
      %1147 = vmatpush1.bf16.msra.mxu0 %v1144
      %1148 = vmatprep.subr.bf16.mxu0 0
      %1149 = vmatpush1.bf16.msra.mxu0 0
      %1150 = vmatprep.subr.bf16.mxu0 0
      %1151 = vmatpush1.bf16.msra.mxu0 0
      %1152 = vmatprep.subr.bf16.mxu0 0
      %1153 = vmatpush1.bf16.msra.mxu0 0
      %1154 = vmatprep.subr.bf16.mxu0 0
      %1155 = vmatpush1.bf16.msra.mxu0 0
      %1156 = vmatprep.subr.bf16.mxu0 0
      %1157 = vmatpush1.bf16.msra.mxu0 0
      %1158 = vmatprep.subr.bf16.mxu0 0
      %1159 = vmatpush1.bf16.msra.mxu0 0
      %1160 = vmatprep.subr.bf16.mxu0 0
      %1161 = vmatpush1.bf16.msra.mxu0 0
      %1162 = vmatprep.subr.bf16.mxu0 0
      %1163 = vmatpush1.bf16.msra.mxu0 0
      %1164 = vmatprep.subr.bf16.mxu0 0
      %1165 = vmatpush1.bf16.msra.mxu0 0
      %1166 = vmatprep.subr.bf16.mxu0 0
      %1167 = vmatpush1.bf16.msra.mxu0 0
      %1168 = vmatprep.subr.bf16.mxu0 0
      %1169 = vmatpush1.bf16.msra.mxu0 0
      %1170 = vmatprep.subr.bf16.mxu0 0
      %1171 = vmatpush1.bf16.msra.mxu0 0
      %1172 = vmatprep.subr.bf16.mxu0 0
      %1173 = vmatpush1.bf16.msra.mxu0 0
      %1174 = vmatprep.subr.bf16.mxu0 0
      %1175 = vmatpush1.bf16.msra.mxu0 0
      %1176 = vmatprep.subr.bf16.mxu0 0
      %1177 = vmatpush1.bf16.msra.mxu0 0
      %1178 = vmatprep.mubr.bf16.mxu0 0
      %1179 = vmatmul.mubr.bf16.gmra.mrb[0].mxu0 %v1140
      %v1180 = vpop.f32.mrb[0].mxu0
      %v1181 = vadd.f32 %v1136, %v1180
      %v1182 = vpop.f32.mrb[0].mxu0
      %v1183 = vpop.f32.mrb[0].mxu0
      %v1184 = vpop.f32.mrb[0].mxu0
      %1185 = vdwg.mxu0
      %v1186 = vxor.u32 %v1181, 2147483648
      %v1187 = vmul.f32 %v1186, 1.442695
      %v1188 = vpow.pop %v1187
      %v1189 = vadd.f32 %v1188, 1.0
      %v1190 = vrcp.pop %v1189
      %v1191 = vmul.f32 1.0, %v1190
      %v1192 = vpack.c.bf16 %v1191, %v1191
      %v1201 = vunpack.c.l.b16 %v516
      %v1202 = vunpack.c.l.b16 %v517
      %v1203 = vunpack.c.l.b16 %v518
      %v1204 = vunpack.c.l.b16 %v519
      %v1205 = vunpack.c.l.b16 %v520
      %v1206 = vunpack.c.l.b16 %v521
      %v1207 = vunpack.c.l.b16 %v522
      %v1208 = vunpack.c.l.b16 %v523
      %v1209 = vpack.c.b16 %v1202, %v1201
      %v1210 = vpack.c.b16 %v1204, %v1203
      %v1211 = vpack.c.b16 %v1206, %v1205
      %v1212 = vpack.c.b16 %v1208, %v1207
      %vm1213 = vcmask 15360
      %v1215 = vsel %vm1213, %v1209, 0
      %v1218 = vsel %vm1213, %v1210, 0
      %v1221 = vsel %vm1213, %v1211, 0
      %v1224 = vsel %vm1213, %v1212, 0
      %vm1226 = vcmask 1040384
      %v1228 = vsel %vm1226, %v1192, 0
      %1230 = vmatprep.subr.bf16.mxu0 0
      %1231 = vmatpush1.bf16.msra.mxu0 %v1228
      %1232 = vmatprep.subr.bf16.mxu0 0
      %1233 = vmatpush1.bf16.msra.mxu0 0
      %1234 = vmatprep.subr.bf16.mxu0 0
      %1235 = vmatpush1.bf16.msra.mxu0 0
      %1236 = vmatprep.subr.bf16.mxu0 0
      %1237 = vmatpush1.bf16.msra.mxu0 0
      %1238 = vmatprep.subr.bf16.mxu0 0
      %1239 = vmatpush1.bf16.msra.mxu0 0
      %1240 = vmatprep.subr.bf16.mxu0 0
      %1241 = vmatpush1.bf16.msra.mxu0 0
      %1242 = vmatprep.subr.bf16.mxu0 0
      %1243 = vmatpush1.bf16.msra.mxu0 0
      %1244 = vmatprep.subr.bf16.mxu0 0
      %1245 = vmatpush1.bf16.msra.mxu0 0
      %1246 = vmatprep.subr.bf16.mxu0 0
      %1247 = vmatpush1.bf16.msra.mxu0 0
      %1248 = vmatprep.subr.bf16.mxu0 0
      %1249 = vmatpush1.bf16.msra.mxu0 0
      %1250 = vmatprep.subr.bf16.mxu0 0
      %1251 = vmatpush1.bf16.msra.mxu0 0
      %1252 = vmatprep.subr.bf16.mxu0 0
      %1253 = vmatpush1.bf16.msra.mxu0 0
      %1254 = vmatprep.subr.bf16.mxu0 0
      %1255 = vmatpush1.bf16.msra.mxu0 0
      %1256 = vmatprep.subr.bf16.mxu0 0
      %1257 = vmatpush1.bf16.msra.mxu0 0
      %1258 = vmatprep.subr.bf16.mxu0 0
      %1259 = vmatpush1.bf16.msra.mxu0 0
      %1260 = vmatprep.subr.bf16.mxu0 0
      %1261 = vmatpush1.bf16.msra.mxu0 0
      %1262 = vmatprep.mubr.bf16.mxu0 0
      %1263 = vmatmul.mubr.bf16.gmra.mrb[0].mxu0 %v1215
      %v1264 = vpop.f32.mrb[0].mxu0
      %v1265 = vadd.f32 0.0, %v1264
      %v1266 = vpop.f32.mrb[0].mxu0
      %v1267 = vpop.f32.mrb[0].mxu0
      %v1268 = vadd.f32 0.0, %v1267
      %v1269 = vpop.f32.mrb[0].mxu0
      %1270 = vmatprep.mubr.bf16.mxu0 0
      %1271 = vmatmul.mubr.bf16.gmra.mrb[0].mxu0 %v1218
      %v1272 = vpop.f32.mrb[0].mxu0
      %v1273 = vadd.f32 0.0, %v1272
      %v1274 = vpop.f32.mrb[0].mxu0
      %v1275 = vpop.f32.mrb[0].mxu0
      %v1276 = vadd.f32 0.0, %v1275
      %v1277 = vpop.f32.mrb[0].mxu0
      %1278 = vmatprep.mubr.bf16.mxu0 0
      %1279 = vmatmul.mubr.bf16.gmra.mrb[0].mxu0 %v1221
      %v1280 = vpop.f32.mrb[0].mxu0
      %v1281 = vadd.f32 0.0, %v1280
      %v1282 = vpop.f32.mrb[0].mxu0
      %v1283 = vpop.f32.mrb[0].mxu0
      %v1284 = vadd.f32 0.0, %v1283
      %v1285 = vpop.f32.mrb[0].mxu0
      %1286 = vmatprep.mubr.bf16.mxu0 0
      %1287 = vmatmul.mubr.bf16.gmra.mrb[0].mxu0 %v1224
      %v1288 = vpop.f32.mrb[0].mxu0
      %v1289 = vadd.f32 0.0, %v1288
      %v1290 = vpop.f32.mrb[0].mxu0
      %v1291 = vpop.f32.mrb[0].mxu0
      %v1292 = vadd.f32 0.0, %v1291
      %v1293 = vpop.f32.mrb[0].mxu0
      %1294 = vdwg.mxu0
      %v1295 = vunpack.c.l.bf16 %v524
      %v1296 = vunpack.c.l.bf16 %v525
      %v1297 = vunpack.c.l.bf16 %v526
      %v1298 = vunpack.c.l.bf16 %v527
      %v1299 = vunpack.c.l.bf16 %v528
      %v1300 = vunpack.c.l.bf16 %v529
      %v1301 = vunpack.c.l.bf16 %v530
      %v1302 = vunpack.c.l.bf16 %v531
      %v1303 = vadd.f32 %v1295, %v968
      %v1304 = vadd.f32 %v1296, %v971
      %v1305 = vadd.f32 %v1297, %v976
      %v1306 = vadd.f32 %v1298, %v979
      %v1307 = vadd.f32 %v1299, %v984
      %v1308 = vadd.f32 %v1300, %v987
      %v1309 = vadd.f32 %v1301, %v992
      %v1310 = vadd.f32 %v1302, %v995
      %v1311 = vadd.f32 %v1303, %v1265
      %v1312 = vadd.f32 %v1304, %v1268
      %v1313 = vadd.f32 %v1305, %v1273
      %v1314 = vadd.f32 %v1306, %v1276
      %v1315 = vadd.f32 %v1307, %v1281
      %v1316 = vadd.f32 %v1308, %v1284
      %v1317 = vadd.f32 %v1309, %v1289
      %v1318 = vadd.f32 %v1310, %v1292
      %v1319 = vmax.f32 %v1311, 0.0
      %v1320 = vmax.f32 %v1312, 0.0
      %v1321 = vmax.f32 %v1313, 0.0
      %v1322 = vmax.f32 %v1314, 0.0
      %v1323 = vmax.f32 %v1315, 0.0
      %v1324 = vmax.f32 %v1316, 0.0
      %v1325 = vmax.f32 %v1317, 0.0
      %v1326 = vmax.f32 %v1318, 0.0
      %v1327 = vpack.c.bf16 %v1320, %v1319
      %v1328 = vpack.c.bf16 %v1322, %v1321
      %v1329 = vpack.c.bf16 %v1324, %v1323
      %v1330 = vpack.c.bf16 %v1326, %v1325
      %s1331 = scalar_lea.vmem %s5, 32
      %v1332 = vld [vmem:[%s1331] sm:$0xf]
      %v1333 = vld [vmem:[%s1331 + $0x4] sm:$0xf]
      %v1334 = vld [vmem:[%s1331 + $0x8] sm:$0xf]
      %v1335 = vld [vmem:[%s1331 + $0xc] sm:$0xf]
      %v1336 = vld [vmem:[%s1331 + $0x10] sm:$0xf]
      %v1337 = vld [vmem:[%s1331 + $0x14] sm:$0xf]
      %v1338 = vld [vmem:[%s1331 + $0x18] sm:$0xf]
      %v1339 = vld [vmem:[%s1331 + $0x1c] sm:$0xf]
      %s1340 = scalar_lea.vmem %s6, 1
      %v1341 = vld [vmem:[%s1340] sm:$0x1]
      %v1343 = vlaneseq
      %v1344 = vshrl.u32 %v1343, 7
      %v1345 = vsub.s32 0, %v1344
      %v1346 = vrot.slane %v1341, %v1345
      %v1356 = vunpack.c.l.b16 %v1332
      %v1357 = vunpack.c.l.b16 %v1333
      %v1358 = vunpack.c.l.b16 %v1334
      %v1359 = vunpack.c.l.b16 %v1335
      %v1360 = vunpack.c.l.b16 %v1336
      %v1361 = vunpack.c.l.b16 %v1337
      %v1362 = vunpack.c.l.b16 %v1338
      %v1363 = vunpack.c.l.b16 %v1339
      %v1364 = vpack.c.b16 %v1357, %v1356
      %v1365 = vpack.c.b16 %v1359, %v1358
      %v1366 = vpack.c.b16 %v1361, %v1360
      %v1367 = vpack.c.b16 %v1363, %v1362
      %v1373 = vsel %vm591, %v1327, 0
      %v1376 = vsel %vm591, %v1328, 0
      %v1379 = vsel %vm591, %v1329, 0
      %v1382 = vsel %vm591, %v1330, 0
      %1384 = vmatprep.subr.bf16.mxu0 0
      %1385 = vmatpush1.bf16.msra.mxu0 %v1364
      %1386 = vmatprep.subr.bf16.mxu0 0
      %1387 = vmatpush1.bf16.msra.mxu0 %v1365
      %1388 = vmatprep.subr.bf16.mxu0 0
      %1389 = vmatpush1.bf16.msra.mxu0 %v1366
      %1390 = vmatprep.subr.bf16.mxu0 0
      %1391 = vmatpush1.bf16.msra.mxu0 %v1367
      %1392 = vmatprep.subr.bf16.mxu0 0
      %1393 = vmatpush1.bf16.msra.mxu0 0
      %1394 = vmatprep.subr.bf16.mxu0 0
      %1395 = vmatpush1.bf16.msra.mxu0 0
      %1396 = vmatprep.subr.bf16.mxu0 0
      %1397 = vmatpush1.bf16.msra.mxu0 0
      %1398 = vmatprep.subr.bf16.mxu0 0
      %1399 = vmatpush1.bf16.msra.mxu0 0
      %1400 = vmatprep.subr.bf16.mxu0 0
      %1401 = vmatpush1.bf16.msra.mxu0 0
      %1402 = vmatprep.subr.bf16.mxu0 0
      %1403 = vmatpush1.bf16.msra.mxu0 0
      %1404 = vmatprep.subr.bf16.mxu0 0
      %1405 = vmatpush1.bf16.msra.mxu0 0
      %1406 = vmatprep.subr.bf16.mxu0 0
      %1407 = vmatpush1.bf16.msra.mxu0 0
      %1408 = vmatprep.subr.bf16.mxu0 0
      %1409 = vmatpush1.bf16.msra.mxu0 0
      %1410 = vmatprep.subr.bf16.mxu0 0
      %1411 = vmatpush1.bf16.msra.mxu0 0
      %1412 = vmatprep.subr.bf16.mxu0 0
      %1413 = vmatpush1.bf16.msra.mxu0 0
      %1414 = vmatprep.subr.bf16.mxu0 0
      %1415 = vmatpush1.bf16.msra.mxu0 0
      %1416 = vmatprep.mubr.bf16.mxu0 0
      %1417 = vmatmul.mubr.bf16.gmra.mrb[0].mxu0 %v1373
      %v1418 = vpop.f32.mrb[0].mxu0
      %v1419 = vadd.f32 %v1346, %v1418
      %v1420 = vpop.f32.mrb[0].mxu0
      %v1421 = vpop.f32.mrb[0].mxu0
      %v1422 = vadd.f32 %v1346, %v1421
      %v1423 = vpop.f32.mrb[0].mxu0
      %1424 = vmatprep.mubr.bf16.mxu0 0
      %1425 = vmatmul.mubr.bf16.gmra.mrb[0].mxu0 %v1376
      %v1426 = vpop.f32.mrb[0].mxu0
      %v1427 = vadd.f32 %v1346, %v1426
      %v1428 = vpop.f32.mrb[0].mxu0
      %v1429 = vpop.f32.mrb[0].mxu0
      %v1430 = vadd.f32 %v1346, %v1429
      %v1431 = vpop.f32.mrb[0].mxu0
      %1432 = vmatprep.mubr.bf16.mxu0 0
      %1433 = vmatmul.mubr.bf16.gmra.mrb[0].mxu0 %v1379
      %v1434 = vpop.f32.mrb[0].mxu0
      %v1435 = vadd.f32 %v1346, %v1434
      %v1436 = vpop.f32.mrb[0].mxu0
      %v1437 = vpop.f32.mrb[0].mxu0
      %v1438 = vadd.f32 %v1346, %v1437
      %v1439 = vpop.f32.mrb[0].mxu0
      %1440 = vmatprep.mubr.bf16.mxu0 0
      %1441 = vmatmul.mubr.bf16.gmra.mrb[0].mxu0 %v1382
      %v1442 = vpop.f32.mrb[0].mxu0
      %v1443 = vadd.f32 %v1346, %v1442
      %v1444 = vpop.f32.mrb[0].mxu0
      %v1445 = vpop.f32.mrb[0].mxu0
      %v1446 = vadd.f32 %v1346, %v1445
      %v1447 = vpop.f32.mrb[0].mxu0
      %1448 = vdwg.mxu0
      %v1449 = vmax.f32 %v1419, 0.0
      %v1450 = vmax.f32 %v1422, 0.0
      %v1451 = vmax.f32 %v1427, 0.0
      %v1452 = vmax.f32 %v1430, 0.0
      %v1453 = vmax.f32 %v1435, 0.0
      %v1454 = vmax.f32 %v1438, 0.0
      %v1455 = vmax.f32 %v1443, 0.0
      %v1456 = vmax.f32 %v1446, 0.0
      %s1457 = scalar_lea.vmem %s7, 3
      %v1458 = vld [vmem:[%s1457] sm:$0x1]
      %v1459 = vld [vmem:[%s1457 + $0x1] sm:$0x1]
      %v1460 = vld [vmem:[%s1457 + $0x2] sm:$0x1]
      %v1461 = vrot.slane %v1449, 7
      %v1462 = vrot.slane %v1450, 7
      %v1463 = vrot.slane %v1451, 7
      %v1464 = vrot.slane %v1452, 7
      %v1465 = vrot.slane %v1453, 7
      %v1466 = vrot.slane %v1454, 7
      %v1467 = vrot.slane %v1455, 7
      %v1468 = vrot.slane %v1456, 7
      %v1469 = vsel %vm690, %v1467, %v1468
      %v1470 = vsel %vm690, %v1466, %v1467
      %v1471 = vsel %vm690, %v1465, %v1466
      %v1472 = vsel %vm690, %v1464, %v1465
      %v1473 = vsel %vm690, %v1463, %v1464
      %v1474 = vsel %vm690, %v1462, %v1463
      %v1475 = vsel %vm690, %v1461, %v1462
      %v1476 = vsel %vm690, %v1468, %v1461
      %v1477 = vmul.f32 %v1476, %v702
      %v1478 = vmul.f32 %v1475, %v707
      %v1479 = vmul.f32 %v1474, %v712
      %v1480 = vmul.f32 %v1473, %v717
      %v1481 = vmul.f32 %v1472, %v722
      %v1482 = vmul.f32 %v1471, %v727
      %v1483 = vmul.f32 %v1470, %v732
      %v1484 = vmul.f32 %v1469, %v737
      %v1485 = vrot.slane %v1449, 1
      %v1486 = vrot.slane %v1450, 1
      %v1487 = vrot.slane %v1451, 1
      %v1488 = vrot.slane %v1452, 1
      %v1489 = vrot.slane %v1453, 1
      %v1490 = vrot.slane %v1454, 1
      %v1491 = vrot.slane %v1455, 1
      %v1492 = vrot.slane %v1456, 1
      %v1493 = vsel %vm755, %v1491, %v1492
      %v1494 = vsel %vm755, %v1490, %v1491
      %v1495 = vsel %vm755, %v1489, %v1490
      %v1496 = vsel %vm755, %v1488, %v1489
      %v1497 = vsel %vm755, %v1487, %v1488
      %v1498 = vsel %vm755, %v1486, %v1487
      %v1499 = vsel %vm755, %v1485, %v1486
      %v1500 = vsel %vm755, %v1492, %v1485
      %v1501 = vmul.f32 %v1499, %v767
      %v1502 = vmul.f32 %v1498, %v772
      %v1503 = vmul.f32 %v1497, %v777
      %v1504 = vmul.f32 %v1496, %v782
      %v1505 = vmul.f32 %v1495, %v787
      %v1506 = vmul.f32 %v1494, %v792
      %v1507 = vmul.f32 %v1493, %v797
      %v1508 = vmul.f32 %v1500, %v802
      %v1510 = vlaneseq
      %v1511 = vshrl.u32 %v1510, 7
      %v1512 = vsub.s32 0, %v1511
      %v1513 = vrot.slane %v1458, %v1512
      %v1515 = vmul.f32 %v1477, %v1513
      %v1516 = vmul.f32 %v1478, %v1513
      %v1517 = vmul.f32 %v1479, %v1513
      %v1518 = vmul.f32 %v1480, %v1513
      %v1519 = vmul.f32 %v1481, %v1513
      %v1520 = vmul.f32 %v1482, %v1513
      %v1521 = vmul.f32 %v1483, %v1513
      %v1522 = vmul.f32 %v1484, %v1513
      %v1524 = vlaneseq
      %v1525 = vshrl.u32 %v1524, 7
      %v1526 = vsub.s32 0, %v1525
      %v1527 = vrot.slane %v1459, %v1526
      %v1529 = vmul.f32 %v1449, %v1527
      %v1530 = vmul.f32 %v1450, %v1527
      %v1531 = vmul.f32 %v1451, %v1527
      %v1532 = vmul.f32 %v1452, %v1527
      %v1533 = vmul.f32 %v1453, %v1527
      %v1534 = vmul.f32 %v1454, %v1527
      %v1535 = vmul.f32 %v1455, %v1527
      %v1536 = vmul.f32 %v1456, %v1527
      %v1537 = vadd.f32 %v1515, %v1529
      %v1538 = vadd.f32 %v1516, %v1530
      %v1539 = vadd.f32 %v1517, %v1531
      %v1540 = vadd.f32 %v1518, %v1532
      %v1541 = vadd.f32 %v1519, %v1533
      %v1542 = vadd.f32 %v1520, %v1534
      %v1543 = vadd.f32 %v1521, %v1535
      %v1544 = vadd.f32 %v1522, %v1536
      %v1546 = vlaneseq
      %v1547 = vshrl.u32 %v1546, 7
      %v1548 = vsub.s32 0, %v1547
      %v1549 = vrot.slane %v1460, %v1548
      %v1551 = vmul.f32 %v1501, %v1549
      %v1552 = vmul.f32 %v1502, %v1549
      %v1553 = vmul.f32 %v1503, %v1549
      %v1554 = vmul.f32 %v1504, %v1549
      %v1555 = vmul.f32 %v1505, %v1549
      %v1556 = vmul.f32 %v1506, %v1549
      %v1557 = vmul.f32 %v1507, %v1549
      %v1558 = vmul.f32 %v1508, %v1549
      %v1559 = vadd.f32 %v1537, %v1551
      %v1560 = vadd.f32 %v1538, %v1552
      %v1561 = vadd.f32 %v1539, %v1553
      %v1562 = vadd.f32 %v1540, %v1554
      %v1563 = vadd.f32 %v1541, %v1555
      %v1564 = vadd.f32 %v1542, %v1556
      %v1565 = vadd.f32 %v1543, %v1557
      %v1566 = vadd.f32 %v1544, %v1558
      %s1567 = scalar_lea.vmem %s8, 1
      %v1568 = vld [vmem:[%s1567] sm:$0x1]
      %v1570 = vlaneseq
      %v1571 = vshrl.u32 %v1570, 7
      %v1572 = vsub.s32 0, %v1571
      %v1573 = vrot.slane %v1568, %v1572
      %v1575 = vadd.f32 %v1559, %v1573
      %v1576 = vadd.f32 %v1560, %v1573
      %v1577 = vadd.f32 %v1561, %v1573
      %v1578 = vadd.f32 %v1562, %v1573
      %v1579 = vadd.f32 %v1563, %v1573
      %v1580 = vadd.f32 %v1564, %v1573
      %v1581 = vadd.f32 %v1565, %v1573
      %v1582 = vadd.f32 %v1566, %v1573
      %v1583 = vmax.f32 %v1575, 0.0
      %v1584 = vmax.f32 %v1576, 0.0
      %v1585 = vmax.f32 %v1577, 0.0
      %v1586 = vmax.f32 %v1578, 0.0
      %v1587 = vmax.f32 %v1579, 0.0
      %v1588 = vmax.f32 %v1580, 0.0
      %v1589 = vmax.f32 %v1581, 0.0
      %v1590 = vmax.f32 %v1582, 0.0
      %v1591 = vpack.c.bf16 %v1584, %v1583
      %v1592 = vpack.c.bf16 %v1586, %v1585
      %v1593 = vpack.c.bf16 %v1588, %v1587
      %v1594 = vpack.c.bf16 %v1590, %v1589
      %s1595 = scalar_lea.vmem %s9, 16
      %v1596 = vld [vmem:[%s1595] sm:$0xf]
      %v1597 = vld [vmem:[%s1595 + $0x4] sm:$0xf]
      %v1598 = vld [vmem:[%s1595 + $0x8] sm:$0xf]
      %v1599 = vld [vmem:[%s1595 + $0xc] sm:$0xf]
      %s1600 = scalar_lea.vmem %s10, 1
      %v1601 = vld [vmem:[%s1600] sm:$0x1]
      %v1603 = vlaneseq
      %v1604 = vshrl.u32 %v1603, 7
      %v1605 = vsub.s32 0, %v1604
      %v1606 = vrot.slane %v1601, %v1605
      %v1612 = vunpack.c.l.b16 %v1596
      %v1613 = vunpack.c.l.b16 %v1597
      %v1614 = vunpack.c.l.b16 %v1598
      %v1615 = vunpack.c.l.b16 %v1599
      %v1616 = vpack.c.b16 %v1613, %v1612
      %v1617 = vpack.c.b16 %v1615, %v1614
      %v1621 = vsel %vm920, %v1591, 0
      %v1624 = vsel %vm920, %v1592, 0
      %v1627 = vsel %vm920, %v1593, 0
      %v1630 = vsel %vm920, %v1594, 0
      %1632 = vmatprep.subr.bf16.mxu0 0
      %1633 = vmatpush1.bf16.msra.mxu0 %v1616
      %1634 = vmatprep.subr.bf16.mxu0 0
      %1635 = vmatpush1.bf16.msra.mxu0 %v1617
      %1636 = vmatprep.subr.bf16.mxu0 0
      %1637 = vmatpush1.bf16.msra.mxu0 0
      %1638 = vmatprep.subr.bf16.mxu0 0
      %1639 = vmatpush1.bf16.msra.mxu0 0
      %1640 = vmatprep.subr.bf16.mxu0 0
      %1641 = vmatpush1.bf16.msra.mxu0 0
      %1642 = vmatprep.subr.bf16.mxu0 0
      %1643 = vmatpush1.bf16.msra.mxu0 0
      %1644 = vmatprep.subr.bf16.mxu0 0
      %1645 = vmatpush1.bf16.msra.mxu0 0
      %1646 = vmatprep.subr.bf16.mxu0 0
      %1647 = vmatpush1.bf16.msra.mxu0 0
      %1648 = vmatprep.subr.bf16.mxu0 0
      %1649 = vmatpush1.bf16.msra.mxu0 0
      %1650 = vmatprep.subr.bf16.mxu0 0
      %1651 = vmatpush1.bf16.msra.mxu0 0
      %1652 = vmatprep.subr.bf16.mxu0 0
      %1653 = vmatpush1.bf16.msra.mxu0 0
      %1654 = vmatprep.subr.bf16.mxu0 0
      %1655 = vmatpush1.bf16.msra.mxu0 0
      %1656 = vmatprep.subr.bf16.mxu0 0
      %1657 = vmatpush1.bf16.msra.mxu0 0
      %1658 = vmatprep.subr.bf16.mxu0 0
      %1659 = vmatpush1.bf16.msra.mxu0 0
      %1660 = vmatprep.subr.bf16.mxu0 0
      %1661 = vmatpush1.bf16.msra.mxu0 0
      %1662 = vmatprep.subr.bf16.mxu0 0
      %1663 = vmatpush1.bf16.msra.mxu0 0
      %1664 = vmatprep.mubr.bf16.mxu0 0
      %1665 = vmatmul.mubr.bf16.gmra.mrb[0].mxu0 %v1621
      %v1666 = vpop.f32.mrb[0].mxu0
      %v1667 = vadd.f32 %v1606, %v1666
      %v1668 = vpop.f32.mrb[0].mxu0
      %v1669 = vpop.f32.mrb[0].mxu0
      %v1670 = vadd.f32 %v1606, %v1669
      %v1671 = vpop.f32.mrb[0].mxu0
      %1672 = vmatprep.mubr.bf16.mxu0 0
      %1673 = vmatmul.mubr.bf16.gmra.mrb[0].mxu0 %v1624
      %v1674 = vpop.f32.mrb[0].mxu0
      %v1675 = vadd.f32 %v1606, %v1674
      %v1676 = vpop.f32.mrb[0].mxu0
      %v1677 = vpop.f32.mrb[0].mxu0
      %v1678 = vadd.f32 %v1606, %v1677
      %v1679 = vpop.f32.mrb[0].mxu0
      %1680 = vmatprep.mubr.bf16.mxu0 0
      %1681 = vmatmul.mubr.bf16.gmra.mrb[0].mxu0 %v1627
      %v1682 = vpop.f32.mrb[0].mxu0
      %v1683 = vadd.f32 %v1606, %v1682
      %v1684 = vpop.f32.mrb[0].mxu0
      %v1685 = vpop.f32.mrb[0].mxu0
      %v1686 = vadd.f32 %v1606, %v1685
      %v1687 = vpop.f32.mrb[0].mxu0
      %1688 = vmatprep.mubr.bf16.mxu0 0
      %1689 = vmatmul.mubr.bf16.gmra.mrb[0].mxu0 %v1630
      %v1690 = vpop.f32.mrb[0].mxu0
      %v1691 = vadd.f32 %v1606, %v1690
      %v1692 = vpop.f32.mrb[0].mxu0
      %v1693 = vpop.f32.mrb[0].mxu0
      %v1694 = vadd.f32 %v1606, %v1693
      %v1695 = vpop.f32.mrb[0].mxu0
      %1696 = vdwg.mxu0
      %v1697 = vpack.c.bf16 %v1670, %v1667
      %v1698 = vpack.c.bf16 %v1678, %v1675
      %v1699 = vpack.c.bf16 %v1686, %v1683
      %v1700 = vpack.c.bf16 %v1694, %v1691
      %1701 = vmatprep.subr.bf16.mxu0 0
      %1702 = vmatpush1.bf16.msra.mxu0 %v1697
      %1703 = vmatprep.subr.bf16.mxu0 0
      %1704 = vmatpush1.bf16.msra.mxu0 %v1698
      %1705 = vmatprep.subr.bf16.mxu0 0
      %1706 = vmatpush1.bf16.msra.mxu0 %v1699
      %1707 = vmatprep.subr.bf16.mxu0 0
      %1708 = vmatpush1.bf16.msra.mxu0 %v1700
      %1709 = vmatprep.subr.bf16.mxu0 0
      %1710 = vmatpush1.bf16.msra.mxu0 0
      %1711 = vmatprep.subr.bf16.mxu0 0
      %1712 = vmatpush1.bf16.msra.mxu0 0
      %1713 = vmatprep.subr.bf16.mxu0 0
      %1714 = vmatpush1.bf16.msra.mxu0 0
      %1715 = vmatprep.subr.bf16.mxu0 0
      %1716 = vmatpush1.bf16.msra.mxu0 0
      %1717 = vmatprep.subr.bf16.mxu0 0
      %1718 = vmatpush1.bf16.msra.mxu0 0
      %1719 = vmatprep.subr.bf16.mxu0 0
      %1720 = vmatpush1.bf16.msra.mxu0 0
      %1721 = vmatprep.subr.bf16.mxu0 0
      %1722 = vmatpush1.bf16.msra.mxu0 0
      %1723 = vmatprep.subr.bf16.mxu0 0
      %1724 = vmatpush1.bf16.msra.mxu0 0
      %1725 = vmatprep.subr.bf16.mxu0 0
      %1726 = vmatpush1.bf16.msra.mxu0 0
      %1727 = vmatprep.subr.bf16.mxu0 0
      %1728 = vmatpush1.bf16.msra.mxu0 0
      %1729 = vmatprep.subr.bf16.mxu0 0
      %1730 = vmatpush1.bf16.msra.mxu0 0
      %1731 = vmatprep.subr.bf16.mxu0 0
      %1732 = vmatpush1.bf16.msra.mxu0 0
      %1733 = vmatprep.mubr.bf16.mxu0 0
      %1734 = vmatmul.mubr.bf16.gmra.mrb[0].mxu0 %v1003
      %v1735 = vpop.f32.mrb[0].mxu0
      %v1736 = vadd.f32 0.0, %v1735
      %v1737 = vpop.f32.mrb[0].mxu0
      %v1738 = vpop.f32.mrb[0].mxu0
      %v1739 = vpop.f32.mrb[0].mxu0
      %1740 = vdwg.mxu0
      %v1741 = vpack.c.bf16 %v1736, %v1736
      %s1742 = scalar_lea.vmem %s11, 32
      %v1743 = vld [vmem:[%s1742] sm:$0xf]
      %v1744 = vld [vmem:[%s1742 + $0x4] sm:$0xf]
      %v1745 = vld [vmem:[%s1742 + $0x8] sm:$0xf]
      %v1746 = vld [vmem:[%s1742 + $0xc] sm:$0xf]
      %v1747 = vld [vmem:[%s1742 + $0x10] sm:$0xf]
      %v1748 = vld [vmem:[%s1742 + $0x14] sm:$0xf]
      %v1749 = vld [vmem:[%s1742 + $0x18] sm:$0xf]
      %v1750 = vld [vmem:[%s1742 + $0x1c] sm:$0xf]
      %s1751 = scalar_lea.vmem %s12, 1
      %v1752 = vld [vmem:[%s1751] sm:$0x1]
      %v1754 = vlaneseq
      %v1755 = vshrl.u32 %v1754, 7
      %v1756 = vsub.s32 0, %v1755
      %v1757 = vrot.slane %v1752, %v1756
      %v1767 = vunpack.c.l.b16 %v1743
      %v1768 = vunpack.c.l.b16 %v1744
      %v1769 = vunpack.c.l.b16 %v1745
      %v1770 = vunpack.c.l.b16 %v1746
      %v1771 = vunpack.c.l.b16 %v1747
      %v1772 = vunpack.c.l.b16 %v1748
      %v1773 = vunpack.c.l.b16 %v1749
      %v1774 = vunpack.c.l.b16 %v1750
      %v1775 = vpack.c.b16 %v1768, %v1767
      %v1776 = vpack.c.b16 %v1770, %v1769
      %v1777 = vpack.c.b16 %v1772, %v1771
      %v1778 = vpack.c.b16 %v1774, %v1773
      %v1784 = vsel %vm591, %v1741, 0
      %1786 = vmatprep.subr.bf16.mxu0 0
      %1787 = vmatpush1.bf16.msra.mxu0 %v1775
      %1788 = vmatprep.subr.bf16.mxu0 0
      %1789 = vmatpush1.bf16.msra.mxu0 %v1776
      %1790 = vmatprep.subr.bf16.mxu0 0
      %1791 = vmatpush1.bf16.msra.mxu0 %v1777
      %1792 = vmatprep.subr.bf16.mxu0 0
      %1793 = vmatpush1.bf16.msra.mxu0 %v1778
      %1794 = vmatprep.subr.bf16.mxu0 0
      %1795 = vmatpush1.bf16.msra.mxu0 0
      %1796 = vmatprep.subr.bf16.mxu0 0
      %1797 = vmatpush1.bf16.msra.mxu0 0
      %1798 = vmatprep.subr.bf16.mxu0 0
      %1799 = vmatpush1.bf16.msra.mxu0 0
      %1800 = vmatprep.subr.bf16.mxu0 0
      %1801 = vmatpush1.bf16.msra.mxu0 0
      %1802 = vmatprep.subr.bf16.mxu0 0
      %1803 = vmatpush1.bf16.msra.mxu0 0
      %1804 = vmatprep.subr.bf16.mxu0 0
      %1805 = vmatpush1.bf16.msra.mxu0 0
      %1806 = vmatprep.subr.bf16.mxu0 0
      %1807 = vmatpush1.bf16.msra.mxu0 0
      %1808 = vmatprep.subr.bf16.mxu0 0
      %1809 = vmatpush1.bf16.msra.mxu0 0
      %1810 = vmatprep.subr.bf16.mxu0 0
      %1811 = vmatpush1.bf16.msra.mxu0 0
      %1812 = vmatprep.subr.bf16.mxu0 0
      %1813 = vmatpush1.bf16.msra.mxu0 0
      %1814 = vmatprep.subr.bf16.mxu0 0
      %1815 = vmatpush1.bf16.msra.mxu0 0
      %1816 = vmatprep.subr.bf16.mxu0 0
      %1817 = vmatpush1.bf16.msra.mxu0 0
      %1818 = vmatprep.mubr.bf16.mxu0 0
      %1819 = vmatmul.mubr.bf16.gmra.mrb[0].mxu0 %v1784
      %v1820 = vpop.f32.mrb[0].mxu0
      %v1821 = vadd.f32 %v1757, %v1820
      %v1822 = vpop.f32.mrb[0].mxu0
      %v1823 = vpop.f32.mrb[0].mxu0
      %v1824 = vpop.f32.mrb[0].mxu0
      %1825 = vdwg.mxu0
      %v1826 = vmax.f32 %v1821, 0.0
      %v1827 = vpack.c.bf16 %v1826, %v1826
      %s1828 = scalar_lea.vmem %s13, 2
      %v1829 = vld [vmem:[%s1828] sm:$0x3]
      %s1830 = scalar_lea.vmem %s14, 1
      %v1831 = vld [vmem:[%s1830] sm:$0x1]
      %v1833 = vlaneseq
      %v1834 = vshrl.u32 %v1833, 7
      %v1835 = vsub.s32 0, %v1834
      %v1836 = vrot.slane %v1831, %v1835
      %v1839 = vsel %vm1138, %v1827, 0
      %v1842 = vsel %vm1142, %v1829, 0
      %1844 = vmatprep.subr.bf16.mxu0 0
      %1845 = vmatpush1.bf16.msra.mxu0 %v1842
      %1846 = vmatprep.subr.bf16.mxu0 0
      %1847 = vmatpush1.bf16.msra.mxu0 0
      %1848 = vmatprep.subr.bf16.mxu0 0
      %1849 = vmatpush1.bf16.msra.mxu0 0
      %1850 = vmatprep.subr.bf16.mxu0 0
      %1851 = vmatpush1.bf16.msra.mxu0 0
      %1852 = vmatprep.subr.bf16.mxu0 0
      %1853 = vmatpush1.bf16.msra.mxu0 0
      %1854 = vmatprep.subr.bf16.mxu0 0
      %1855 = vmatpush1.bf16.msra.mxu0 0
      %1856 = vmatprep.subr.bf16.mxu0 0
      %1857 = vmatpush1.bf16.msra.mxu0 0
      %1858 = vmatprep.subr.bf16.mxu0 0
      %1859 = vmatpush1.bf16.msra.mxu0 0
      %1860 = vmatprep.subr.bf16.mxu0 0
      %1861 = vmatpush1.bf16.msra.mxu0 0
      %1862 = vmatprep.subr.bf16.mxu0 0
      %1863 = vmatpush1.bf16.msra.mxu0 0
      %1864 = vmatprep.subr.bf16.mxu0 0
      %1865 = vmatpush1.bf16.msra.mxu0 0
      %1866 = vmatprep.subr.bf16.mxu0 0
      %1867 = vmatpush1.bf16.msra.mxu0 0
      %1868 = vmatprep.subr.bf16.mxu0 0
      %1869 = vmatpush1.bf16.msra.mxu0 0
      %1870 = vmatprep.subr.bf16.mxu0 0
      %1871 = vmatpush1.bf16.msra.mxu0 0
      %1872 = vmatprep.subr.bf16.mxu0 0
      %1873 = vmatpush1.bf16.msra.mxu0 0
      %1874 = vmatprep.subr.bf16.mxu0 0
      %1875 = vmatpush1.bf16.msra.mxu0 0
      %1876 = vmatprep.mubr.bf16.mxu0 0
      %1877 = vmatmul.mubr.bf16.gmra.mrb[0].mxu0 %v1839
      %v1878 = vpop.f32.mrb[0].mxu0
      %v1879 = vadd.f32 %v1836, %v1878
      %v1880 = vpop.f32.mrb[0].mxu0
      %v1881 = vpop.f32.mrb[0].mxu0
      %v1882 = vpop.f32.mrb[0].mxu0
      %1883 = vdwg.mxu0
      %v1884 = vxor.u32 %v1879, 2147483648
      %v1885 = vmul.f32 %v1884, 1.442695
      %v1886 = vpow.pop %v1885
      %v1887 = vadd.f32 %v1886, 1.0
      %v1888 = vrcp.pop %v1887
      %v1889 = vmul.f32 1.0, %v1888
      %v1890 = vpack.c.bf16 %v1889, %v1889
      %v1892 = vsel %vm1226, %v1890, 0
      %1894 = vmatprep.subr.bf16.mxu0 0
      %1895 = vmatpush1.bf16.msra.mxu0 %v1892
      %1896 = vmatprep.subr.bf16.mxu0 0
      %1897 = vmatpush1.bf16.msra.mxu0 0
      %1898 = vmatprep.subr.bf16.mxu0 0
      %1899 = vmatpush1.bf16.msra.mxu0 0
      %1900 = vmatprep.subr.bf16.mxu0 0
      %1901 = vmatpush1.bf16.msra.mxu0 0
      %1902 = vmatprep.subr.bf16.mxu0 0
      %1903 = vmatpush1.bf16.msra.mxu0 0
      %1904 = vmatprep.subr.bf16.mxu0 0
      %1905 = vmatpush1.bf16.msra.mxu0 0
      %1906 = vmatprep.subr.bf16.mxu0 0
      %1907 = vmatpush1.bf16.msra.mxu0 0
      %1908 = vmatprep.subr.bf16.mxu0 0
      %1909 = vmatpush1.bf16.msra.mxu0 0
      %1910 = vmatprep.subr.bf16.mxu0 0
      %1911 = vmatpush1.bf16.msra.mxu0 0
      %1912 = vmatprep.subr.bf16.mxu0 0
      %1913 = vmatpush1.bf16.msra.mxu0 0
      %1914 = vmatprep.subr.bf16.mxu0 0
      %1915 = vmatpush1.bf16.msra.mxu0 0
      %1916 = vmatprep.subr.bf16.mxu0 0
      %1917 = vmatpush1.bf16.msra.mxu0 0
      %1918 = vmatprep.subr.bf16.mxu0 0
      %1919 = vmatpush1.bf16.msra.mxu0 0
      %1920 = vmatprep.subr.bf16.mxu0 0
      %1921 = vmatpush1.bf16.msra.mxu0 0
      %1922 = vmatprep.subr.bf16.mxu0 0
      %1923 = vmatpush1.bf16.msra.mxu0 0
      %1924 = vmatprep.subr.bf16.mxu0 0
      %1925 = vmatpush1.bf16.msra.mxu0 0
      %1926 = vmatprep.mubr.bf16.mxu0 0
      %1927 = vmatmul.mubr.bf16.gmra.mrb[0].mxu0 %v1215
      %v1928 = vpop.f32.mrb[0].mxu0
      %v1929 = vadd.f32 0.0, %v1928
      %v1930 = vpop.f32.mrb[0].mxu0
      %v1931 = vpop.f32.mrb[0].mxu0
      %v1932 = vadd.f32 0.0, %v1931
      %v1933 = vpop.f32.mrb[0].mxu0
      %1934 = vmatprep.mubr.bf16.mxu0 0
      %1935 = vmatmul.mubr.bf16.gmra.mrb[0].mxu0 %v1218
      %v1936 = vpop.f32.mrb[0].mxu0
      %v1937 = vadd.f32 0.0, %v1936
      %v1938 = vpop.f32.mrb[0].mxu0
      %v1939 = vpop.f32.mrb[0].mxu0
      %v1940 = vadd.f32 0.0, %v1939
      %v1941 = vpop.f32.mrb[0].mxu0
      %1942 = vmatprep.mubr.bf16.mxu0 0
      %1943 = vmatmul.mubr.bf16.gmra.mrb[0].mxu0 %v1221
      %v1944 = vpop.f32.mrb[0].mxu0
      %v1945 = vadd.f32 0.0, %v1944
      %v1946 = vpop.f32.mrb[0].mxu0
      %v1947 = vpop.f32.mrb[0].mxu0
      %v1948 = vadd.f32 0.0, %v1947
      %v1949 = vpop.f32.mrb[0].mxu0
      %1950 = vmatprep.mubr.bf16.mxu0 0
      %1951 = vmatmul.mubr.bf16.gmra.mrb[0].mxu0 %v1224
      %v1952 = vpop.f32.mrb[0].mxu0
      %v1953 = vadd.f32 0.0, %v1952
      %v1954 = vpop.f32.mrb[0].mxu0
      %v1955 = vpop.f32.mrb[0].mxu0
      %v1956 = vadd.f32 0.0, %v1955
      %v1957 = vpop.f32.mrb[0].mxu0
      %1958 = vdwg.mxu0
      %v1959 = vunpack.c.l.bf16 %v1327
      %v1960 = vunpack.c.h.bf16 %v1327
      %v1961 = vunpack.c.l.bf16 %v1328
      %v1962 = vunpack.c.h.bf16 %v1328
      %v1963 = vunpack.c.l.bf16 %v1329
      %v1964 = vunpack.c.h.bf16 %v1329
      %v1965 = vunpack.c.l.bf16 %v1330
      %v1966 = vunpack.c.h.bf16 %v1330
      %v1967 = vadd.f32 %v1959, %v1667
      %v1968 = vadd.f32 %v1960, %v1670
      %v1969 = vadd.f32 %v1961, %v1675
      %v1970 = vadd.f32 %v1962, %v1678
      %v1971 = vadd.f32 %v1963, %v1683
      %v1972 = vadd.f32 %v1964, %v1686
      %v1973 = vadd.f32 %v1965, %v1691
      %v1974 = vadd.f32 %v1966, %v1694
      %v1975 = vadd.f32 %v1967, %v1929
      %v1976 = vadd.f32 %v1968, %v1932
      %v1977 = vadd.f32 %v1969, %v1937
      %v1978 = vadd.f32 %v1970, %v1940
      %v1979 = vadd.f32 %v1971, %v1945
      %v1980 = vadd.f32 %v1972, %v1948
      %v1981 = vadd.f32 %v1973, %v1953
      %v1982 = vadd.f32 %v1974, %v1956
      %v1983 = vmax.f32 %v1975, 0.0
      %v1984 = vmax.f32 %v1976, 0.0
      %v1985 = vmax.f32 %v1977, 0.0
      %v1986 = vmax.f32 %v1978, 0.0
      %v1987 = vmax.f32 %v1979, 0.0
      %v1988 = vmax.f32 %v1980, 0.0
      %v1989 = vmax.f32 %v1981, 0.0
      %v1990 = vmax.f32 %v1982, 0.0
      %v1991 = vpack.c.bf16 %v1984, %v1983
      %v1992 = vpack.c.bf16 %v1986, %v1985
      %v1993 = vpack.c.bf16 %v1988, %v1987
      %v1994 = vpack.c.bf16 %v1990, %v1989
      %v1999 = vunpack.c.l.b16 %v1991
      %v2000 = vunpack.c.h.b16 %v1991
      %v2001 = vunpack.c.l.b16 %v1992
      %v2002 = vunpack.c.h.b16 %v1992
      %v2003 = vunpack.c.l.b16 %v1993
      %v2004 = vunpack.c.h.b16 %v1993
      %v2005 = vunpack.c.l.b16 %v1994
      %v2006 = vunpack.c.h.b16 %v1994
      %v2007 = vpack.c.b16 %v1999, %v1999
      %v2008 = vpack.c.b16 %v2000, %v2000
      %v2009 = vpack.c.b16 %v2001, %v2001
      %v2010 = vpack.c.b16 %v2002, %v2002
      %v2011 = vpack.c.b16 %v2003, %v2003
      %v2012 = vpack.c.b16 %v2004, %v2004
      %v2013 = vpack.c.b16 %v2005, %v2005
      %v2014 = vpack.c.b16 %v2006, %v2006
      %vm2023 = vcmask 519168
      %2024 = vst.msk [vmem:[%s496] sm:$0xf] %vm2023, %v2007
      %2025 = vst.msk [vmem:[%s496 + $0x4] sm:$0xf] %vm2023, %v2008
      %2026 = vst.msk [vmem:[%s496 + $0x8] sm:$0xf] %vm2023, %v2009
      %2027 = vst.msk [vmem:[%s496 + $0xc] sm:$0xf] %vm2023, %v2010
      %2028 = vst.msk [vmem:[%s496 + $0x10] sm:$0xf] %vm2023, %v2011
      %2029 = vst.msk [vmem:[%s496 + $0x14] sm:$0xf] %vm2023, %v2012
      %2030 = vst.msk [vmem:[%s496 + $0x18] sm:$0xf] %vm2023, %v2013
      %2031 = vst.msk [vmem:[%s496 + $0x1c] sm:$0xf] %vm2023, %v2014
      %s2032 = smul.u32 8, %s26
      %p2033 = scmp.lt.s32.totalorder %s2032, 63
      %s2034 = scalar_select %p2033, %s2032, 63
      %s2035 = smul.addr %s2034, 4
      %s2036 = scalar_lea.vmem %s15, %s2035
      // Predicated region
      $region81: #{tpu_custom_call.1} parent=79 // pred_check
        %p2037 = pneg %p364
      $region82: #{tpu_custom_call.1} parent=79 // pred_check_branch
        %2039 = sbr.rel (%p2037) target = $region84
      $region83: #{tpu_custom_call.1} parent=79 // pred_region
        %s2040 = smul.u32 8, %s26
      $region84: #{tpu_custom_call.1} parent=79 // pred_fallthru
        _
    $region80: #{tpu_custom_call.1} parent=5 // pred_fallthru
      _
    %p2041 = scmp.le.s32.totalorder 2, %s21
    // Predicated region
    $region85: #{tpu_custom_call.1} parent=5 // pred_check
      %p2042 = pneg %p2041
    $region86: #{tpu_custom_call.1} parent=5 // pred_check_branch
      %2044 = sbr.rel (%p2042) target = $region88
    $region87: #{tpu_custom_call.1} parent=5 // pred_region
      %s2045 = ssub.s32 %s21, 2
      // Predicated region
      $region89: #{tpu_custom_call.1} parent=87 // pred_check
        %p2046 = pneg %p370
      $region90: #{tpu_custom_call.1} parent=87 // pred_check_branch
        %2048 = sbr.rel (%p2046) target = $region92
      $region91: #{tpu_custom_call.1} parent=87 // pred_region
        %s2049 = smul.u32 8, %s27
        %p2050 = scmp.lt.s32.totalorder %s2049, 63
        %s2051 = scalar_select %p2050, %s2049, 63
        %s2052 = smul.addr %s2051, 4
        %s2053 = scalar_lea.vmem %s15, %s2052
      $region92: #{tpu_custom_call.1} parent=87 // pred_fallthru
        _
    $region88: #{tpu_custom_call.1} parent=5 // pred_fallthru
      _
  $region6: #{tpu_custom_call.1} parent=0 // loop_footer
    %s25 = sadd.s32 1, %s21
  $region7: #{tpu_custom_call.1} parent=0 // loop_footer_branch
    %20 = sbr.rel target = $region3
  $region8: #{tpu_custom_call.1} parent=0 // loop_exit
    _

</llo_original>
